<compile_context>
chip_gen: v7x
topology: tpu7x:2x2x1
jax: 0.10.0
libtpu: 0.0.40
codegen_flags: <defaults>
</compile_context>

<pallas_src>
import math
import functools

import jax
import jax.numpy as jnp
from jax.experimental import pallas as pl
from jax.experimental.pallas import tpu as pltpu


def _sinpos_kernel(idx_ref, sel_ref, div_ref, phase_ref, out_ref, *, grouped):
    # idx_ref  : (T, G)  f32  flattened indices, G logical rows packed per output row
    # sel_ref  : (G, L)  f32  one-hot lane-broadcast matrix (used only when grouped)
    # div_ref  : (1, L)  f32  pairwise-interleaved div_term, tiled across lane width
    # phase_ref: (1, L)  f32  [0, pi/2, 0, pi/2, ...] tiled across lane width
    # out_ref  : (T, L)
    idx = idx_ref[...]
    if grouped:
        # Broadcast idx[:, j] across lanes [j*d_model, (j+1)*d_model) with a
        # one-hot MXU matmul.  Exactly one nonzero (==1.0) per column, so with
        # HIGHEST precision the result equals the f32 index bit-for-bit.
        expanded = jax.lax.dot(
            idx,
            sel_ref[...],
            precision=jax.lax.Precision.HIGHEST,
            preferred_element_type=jnp.float32,
        )                                  # (T, L)
    else:
        expanded = idx                     # (T, 1) -> broadcasts against (1, L)
    omega = expanded * div_ref[...] + phase_ref[...]
    out_ref[...] = jnp.sin(omega).astype(out_ref.dtype)   # single EUP sin / element


@functools.partial(jax.jit, static_argnames=("d_model", "out_dtype"))
def sinusoidal_positional_embedding(emb_indices, d_model, out_dtype=jnp.float32):
    if d_model % 2 != 0:
        raise ValueError(
            f"Cannot use sinusoidal positional encoding with odd d_model ({d_model})"
        )

    input_shape = emb_indices.shape
    idx_flat = jnp.reshape(emb_indices.astype(jnp.float32), (-1,))
    n = idx_flat.shape[0]

    # Lane-dense packing: group G consecutive embedding rows per 128-lane output
    # row when d_model is narrow.  Row-major order is preserved, so unpacking is
    # a free reshape.
    if d_model < 128 and 128 % d_model == 0 and n % (128 // d_model) == 0:
        g = 128 // d_model
    else:
        g = 1
    lane_width = g * d_model
    n_rows = n // g

    # div_term (same as the PyTorch buffer), interleaved so lanes 2k and 2k+1
    # both carry div_term[k], tiled G times across the packed lane width.
    half = jnp.exp(
        jnp.arange(0, d_model, 2, dtype=jnp.float32) * (-math.log(10000.0) / d_model)
    )                                                                   # (D/2,)
    div_row = jnp.tile(jnp.repeat(half, 2), g).reshape(1, lane_width)   # (1, L)
    # Phase trick: even lanes sin (phase 0), odd lanes cos == sin(. + pi/2).
    phase_row = jnp.tile(
        jnp.array([0.0, math.pi / 2.0], dtype=jnp.float32), lane_width // 2
    ).reshape(1, lane_width)                                            # (1, L)
    # One-hot broadcast matrix: sel[j, l] = 1 iff l // d_model == j.
    sel = jnp.repeat(jnp.eye(g, dtype=jnp.float32), d_model, axis=1)    # (G, L)

    idx2d = idx_flat.reshape(n_rows, g)

    # Output-block sizing: aim for ~2 MiB blocks (4 MiB double-buffered) so the
    # ~0.35 us/grid-step overhead is amortized, while staying comfortably inside
    # v7x's 64 MiB VMEM and the explicitly raised scoped limit on v5e.
    target_block_bytes = 2 * 1024 * 1024
    bytes_per_row = lane_width * jnp.dtype(out_dtype).itemsize
    tile_rows = max(8, target_block_bytes // bytes_per_row)
    tile_rows = int(min(tile_rows, 4096))
    tile_rows -= tile_rows % 8
    if tile_rows >= n_rows:
        tile_rows = n_rows          # single (possibly ragged / small) block
    grid = (pl.cdiv(n_rows, tile_rows),)   # ragged last block: no pad, no slice copy

    kernel = functools.partial(_sinpos_kernel, grouped=(g > 1))

    out = pl.pallas_call(
        kernel,
        out_shape=jax.ShapeDtypeStruct((n_rows, lane_width), out_dtype),
        grid_spec=pltpu.PrefetchScalarGridSpec(
            num_scalar_prefetch=0,
            grid=grid,
            in_specs=[
                pl.BlockSpec((tile_rows, g), lambda i: (i, 0)),
                pl.BlockSpec((g, lane_width), lambda i: (0, 0)),
                pl.BlockSpec((1, lane_width), lambda i: (0, 0)),
                pl.BlockSpec((1, lane_width), lambda i: (0, 0)),
            ],
            out_specs=pl.BlockSpec((tile_rows, lane_width), lambda i: (i, 0)),
        ),
        compiler_params=pltpu.CompilerParams(
            dimension_semantics=("parallel",),   # shard rows across v7x's 2 TCs
            vmem_limit_bytes=32 * 1024 * 1024,   # raise v5e's 16 MiB default
        ),
    )(idx2d, sel, div_row, phase_row)

    # (n_rows, G*d_model) row-major == (n, d_model) row-major: free reshape.
    return out.reshape(*input_shape, d_model)


def _reference(emb_indices, d_model):
    # Pure-JAX reference mirroring the PyTorch forward exactly.
    input_shape = emb_indices.shape
    div_term = jnp.exp(
        jnp.arange(0, d_model, 2, dtype=jnp.float32) * (-math.log(10000.0) / d_model)
    )
    omegas = emb_indices.astype(jnp.float32).reshape(-1, 1, 1) * div_term.reshape(1, -1, 1)
    emb = jnp.concatenate([jnp.sin(omegas), jnp.cos(omegas)], axis=2)
    return emb.reshape(*input_shape, d_model)


if __name__ == "__main__":
    d_model = 32
    key = jax.random.PRNGKey(0)
    # Arbitrary-shaped indices, as the module accepts (*) -> (*, D).
    emb_indices = jax.random.uniform(key, (2, 8, 16), dtype=jnp.float32) * 100.0

    out = sinusoidal_positional_embedding(emb_indices, d_model)
    out = jax.block_until_ready(out)

    ref = _reference(emb_indices, d_model)
    assert out.shape == (2, 8, 16, d_model), out.shape
    # atol loosened slightly vs. exact cos: odd lanes use sin(w + pi/2) (phase
    # trick), which differs from cos(w) by O(ulp(w)) in the rounded argument.
    assert jnp.allclose(out, ref, atol=1e-4, rtol=1e-5), float(
        jnp.max(jnp.abs(out - ref))
    )

    print("KERNEL_OK")
</pallas_src>

<mosaic_0001>
module attributes {stable_mosaic.version = 11 : i64} {
  func.func @_sinpos_kernel(%arg0: i32, %arg1: memref<64x4xf32, #tpu.memory_space<vmem>>, %arg2: memref<4x128xf32, #tpu.memory_space<vmem>>, %arg3: memref<1x128xf32, #tpu.memory_space<vmem>>, %arg4: memref<1x128xf32, #tpu.memory_space<vmem>>, %arg5: memref<64x128xf32, #tpu.memory_space<vmem>>) attributes {dimension_semantics = [#tpu.dimension_semantics<parallel>], iteration_bounds = array<i64: 1>, scalar_prefetch = 0 : i64, scratch_operands = 0 : i64, tpu.core_type = #tpu.core_type<tc>, window_params = [{transform_indices = @transform_0, window_bounds = array<i64: 64, 4>}, {pipeline_mode = #tpu.pipeline_mode<synchronous>, transform_indices = @transform_1, window_bounds = array<i64: 4, 128>}, {pipeline_mode = #tpu.pipeline_mode<synchronous>, transform_indices = @transform_2, window_bounds = array<i64: 1, 128>}, {pipeline_mode = #tpu.pipeline_mode<synchronous>, transform_indices = @transform_3, window_bounds = array<i64: 1, 128>}, {transform_indices = @transform_4, window_bounds = array<i64: 64, 128>}]} {
    %c0 = arith.constant 0 : index
    %c0_0 = arith.constant 0 : index
    %0 = vector.load %arg1[%c0, %c0_0] : memref<64x4xf32, #tpu.memory_space<vmem>>, vector<64x4xf32>
    %c0_1 = arith.constant 0 : index
    %c0_2 = arith.constant 0 : index
    %1 = vector.load %arg2[%c0_1, %c0_2] : memref<4x128xf32, #tpu.memory_space<vmem>>, vector<4x128xf32>
    %cst = arith.constant dense<0.000000e+00> : vector<64x128xf32>
    %2 = tpu.matmul %0, %1, %cst {dimension_numbers = #tpu.dot_dimension_numbers<[1], [0], [0], [1], [0, 0, 1, 1], [], []>, precision = #tpu.contract_precision<fp32>} : vector<64x4xf32>, vector<4x128xf32>, vector<64x128xf32> -> vector<64x128xf32>
    %c0_3 = arith.constant 0 : index
    %c0_4 = arith.constant 0 : index
    %3 = vector.load %arg3[%c0_3, %c0_4] : memref<1x128xf32, #tpu.memory_space<vmem>>, vector<1x128xf32>
    %4 = vector.broadcast %3 : vector<1x128xf32> to vector<64x128xf32>
    %5 = arith.mulf %2, %4 : vector<64x128xf32>
    %c0_5 = arith.constant 0 : index
    %c0_6 = arith.constant 0 : index
    %6 = vector.load %arg4[%c0_5, %c0_6] : memref<1x128xf32, #tpu.memory_space<vmem>>, vector<1x128xf32>
    %7 = vector.broadcast %6 : vector<1x128xf32> to vector<64x128xf32>
    %8 = arith.addf %5, %7 : vector<64x128xf32>
    %9 = math.sin %8 : vector<64x128xf32>
    %c0_7 = arith.constant 0 : index
    %c0_8 = arith.constant 0 : index
    %10 = vector.load %arg5[%c0_7, %c0_8] : memref<64x128xf32, #tpu.memory_space<vmem>>, vector<64x128xf32>
    tpu.vector_store %arg5[%c0_7, %c0_8], %9 {strides = array<i32>} : memref<64x128xf32, #tpu.memory_space<vmem>>, vector<64x128xf32>,
    return
  }
  func.func @transform_0(%arg0: i32) -> (i32, i32) {
    %c0_i32 = arith.constant 0 : i32
    %c0_i32_0 = arith.constant 0 : i32
    return %arg0, %c0_i32 : i32, i32
  }
  func.func @transform_1(%arg0: i32) -> (i32, i32) {
    %c0_i32 = arith.constant 0 : i32
    %c0_i32_0 = arith.constant 0 : i32
    %c0_i32_1 = arith.constant 0 : i32
    return %c0_i32, %c0_i32_0 : i32, i32
  }
  func.func @transform_2(%arg0: i32) -> (i32, i32) {
    %c0_i32 = arith.constant 0 : i32
    %c0_i32_0 = arith.constant 0 : i32
    %c0_i32_1 = arith.constant 0 : i32
    return %c0_i32, %c0_i32_0 : i32, i32
  }
  func.func @transform_3(%arg0: i32) -> (i32, i32) {
    %c0_i32 = arith.constant 0 : i32
    %c0_i32_0 = arith.constant 0 : i32
    %c0_i32_1 = arith.constant 0 : i32
    return %c0_i32, %c0_i32_0 : i32, i32
  }
  func.func @transform_4(%arg0: i32) -> (i32, i32) {
    %c0_i32 = arith.constant 0 : i32
    %c0_i32_0 = arith.constant 0 : i32
    return %arg0, %c0_i32 : i32, i32
  }
}

</mosaic_0001>

<llo_original>
// kernel: tile.10
$region0: #{tile.10}
  #allocation0 [shape = 's32[1]{0}', space=sflag, size = 0x4, scoped, tag = 'scoped memory for tile.10']
  %s0 = inlined_call_operand.vmem [shape: f32[32], index: 0, kind: input, shape index: {}]
  %s1 = inlined_call_operand.vmem [shape: f32[4,32], index: 1, kind: output, shape index: {}]
  // Predicated region
  $region2: #{tile.10} parent=0 // pred_check
    _
  $region3: #{tile.10} parent=0 // pred_check_branch
    %3 = sbr.rel (0) target = $region5
  $region4: #{tile.10} parent=0 // pred_region
    _
  $region5: #{tile.10} parent=0 // pred_fallthru
    _
  %v4 = vld [vmem:[%s0] ss:$0 sm:$0xff]
  %5 = vst [vmem:[%s1] sm:$0xf] %v4

// kernel: tile.9
$region0: #{tile.9}
  %s0 = inlined_call_operand.vmem [shape: f32[16,2], index: 0, kind: input, shape index: {}]
  %s1 = inlined_call_operand.vmem [shape: f32[32], index: 1, kind: output, shape index: {}]
  $region1: #{tile.9} parent=0
    #allocation0 [shape = 'u8[4096]{0}', space=vmem, size = 0x1000, scoped, tag = 'scoped mem for output reshape']
    %v2 = vld [vmem:[%s0] sm:$0x1]
    %vm3 = vcmask 15360
    %4 = vst.msk [vmem:[#allocation0] sm:$0x1] %vm3, %v2
    %s5 = scalar_lea.vmem %s0, 15
    %v6 = vld [vmem:[%s5] sm:$0x1]
    %7 = vrot.lane.b32.xlu0 %v6, 30
    %v8 = vpop.permute.xlu0 %7
    %vm9 = vcmask 261360
    %10 = vst.msk [vmem:[#allocation0] sm:$0x1] %vm9, %v8
    %s11 = scalar_lea.vmem %s0, 14
    %v12 = vld [vmem:[%s11] sm:$0x1]
    %13 = vrot.lane.b32.xlu0 %v12, 28
    %v14 = vpop.permute.xlu0 %13
    %vm15 = vcmask 244960
    %16 = vst.msk [vmem:[#allocation0] sm:$0x1] %vm15, %v14
    %s17 = scalar_lea.vmem %s0, 13
    %v18 = vld [vmem:[%s17] sm:$0x1]
    %19 = vrot.lane.b32.xlu0 %v18, 26
    %v20 = vpop.permute.xlu0 %19
    %vm21 = vcmask 228560
    %22 = vst.msk [vmem:[#allocation0] sm:$0x1] %vm21, %v20
    %s23 = scalar_lea.vmem %s0, 12
    %v24 = vld [vmem:[%s23] sm:$0x1]
    %25 = vrot.lane.b32.xlu0 %v24, 24
    %v26 = vpop.permute.xlu0 %25
    %vm27 = vcmask 212160
    %28 = vst.msk [vmem:[#allocation0] sm:$0x1] %vm27, %v26
    %s29 = scalar_lea.vmem %s0, 11
    %v30 = vld [vmem:[%s29] sm:$0x1]
    %31 = vrot.lane.b32.xlu0 %v30, 22
    %v32 = vpop.permute.xlu0 %31
    %vm33 = vcmask 195760
    %34 = vst.msk [vmem:[#allocation0] sm:$0x1] %vm33, %v32
    %s35 = scalar_lea.vmem %s0, 10
    %v36 = vld [vmem:[%s35] sm:$0x1]
    %37 = vrot.lane.b32.xlu0 %v36, 20
    %v38 = vpop.permute.xlu0 %37
    %vm39 = vcmask 179360
    %40 = vst.msk [vmem:[#allocation0] sm:$0x1] %vm39, %v38
    %s41 = scalar_lea.vmem %s0, 9
    %v42 = vld [vmem:[%s41] sm:$0x1]
    %43 = vrot.lane.b32.xlu0 %v42, 18
    %v44 = vpop.permute.xlu0 %43
    %vm45 = vcmask 162960
    %46 = vst.msk [vmem:[#allocation0] sm:$0x1] %vm45, %v44
    %s47 = scalar_lea.vmem %s0, 8
    %v48 = vld [vmem:[%s47] sm:$0x1]
    %49 = vrot.lane.b32.xlu0 %v48, 16
    %v50 = vpop.permute.xlu0 %49
    %vm51 = vcmask 146560
    %52 = vst.msk [vmem:[#allocation0] sm:$0x1] %vm51, %v50
    %s53 = scalar_lea.vmem %s0, 7
    %v54 = vld [vmem:[%s53] sm:$0x1]
    %55 = vrot.lane.b32.xlu0 %v54, 14
    %v56 = vpop.permute.xlu0 %55
    %vm57 = vcmask 130160
    %58 = vst.msk [vmem:[#allocation0] sm:$0x1] %vm57, %v56
    %s59 = scalar_lea.vmem %s0, 6
    %v60 = vld [vmem:[%s59] sm:$0x1]
    %61 = vrot.lane.b32.xlu0 %v60, 12
    %v62 = vpop.permute.xlu0 %61
    %vm63 = vcmask 113760
    %64 = vst.msk [vmem:[#allocation0] sm:$0x1] %vm63, %v62
    %s65 = scalar_lea.vmem %s0, 5
    %v66 = vld [vmem:[%s65] sm:$0x1]
    %67 = vrot.lane.b32.xlu0 %v66, 10
    %v68 = vpop.permute.xlu0 %67
    %vm69 = vcmask 97360
    %70 = vst.msk [vmem:[#allocation0] sm:$0x1] %vm69, %v68
    %s71 = scalar_lea.vmem %s0, 4
    %v72 = vld [vmem:[%s71] sm:$0x1]
    %73 = vrot.lane.b32.xlu0 %v72, 8
    %v74 = vpop.permute.xlu0 %73
    %vm75 = vcmask 80960
    %76 = vst.msk [vmem:[#allocation0] sm:$0x1] %vm75, %v74
    %s77 = scalar_lea.vmem %s0, 3
    %v78 = vld [vmem:[%s77] sm:$0x1]
    %79 = vrot.lane.b32.xlu0 %v78, 6
    %v80 = vpop.permute.xlu0 %79
    %vm81 = vcmask 64560
    %82 = vst.msk [vmem:[#allocation0] sm:$0x1] %vm81, %v80
    %s83 = scalar_lea.vmem %s0, 2
    %v84 = vld [vmem:[%s83] sm:$0x1]
    %85 = vrot.lane.b32.xlu0 %v84, 4
    %v86 = vpop.permute.xlu0 %85
    %vm87 = vcmask 48160
    %88 = vst.msk [vmem:[#allocation0] sm:$0x1] %vm87, %v86
    %s89 = scalar_lea.vmem %s0, 1
    %v90 = vld [vmem:[%s89] sm:$0x1]
    %91 = vrot.lane.b32.xlu0 %v90, 2
    %v92 = vpop.permute.xlu0 %91
    %vm93 = vcmask 31760
    %94 = vst.msk [vmem:[#allocation0] sm:$0x1] %vm93, %v92
    %s96 = sshllo.u32 0, 1
    %v98 = vld [vmem:[#allocation0] sm:%s96]
    %s99 = sshllo.u32 0, 1
    %100 = vst [vmem:[%s1] sm:%s99] %v98

// kernel: tile.11
$region0: #{tile.11}
  %s0 = inlined_call_operand.vmem [shape: f32[4,32], index: 0, kind: input, shape index: {}]
  %s1 = inlined_call_operand.vmem [shape: f32[1,128], index: 1, kind: output, shape index: {}]
  $region1: #{tile.11} parent=0
    #allocation0 [shape = 'u8[4096]{0}', space=vmem, size = 0x1000, scoped, tag = 'scoped mem for output reshape']
    #allocation1 [shape = 'u8[4096]{0}', space=vmem, size = 0x1000, scoped, tag = 'scoped mem for input reshape']
    %s3 = sshllo.u32 0, 4
    %v4 = vld [vmem:[%s0] sm:%s3]
    %5 = vst [vmem:[#allocation1] sm:%s3] %v4
    %v6 = vld [vmem:[#allocation1] sm:$0x1]
    %vm7 = vcmask 261120
    %8 = vst.msk [vmem:[#allocation0] sm:$0x1] %vm7, %v6
    %s9 = scalar_lea.vmem [#allocation1], 3
    %v10 = vld [vmem:[%s9] sm:$0x1]
    %11 = vrot.lane.b32.xlu0 %v10, 96
    %v12 = vpop.permute.xlu0 %11
    %vm13 = vcmask 1048320
    %14 = vst.msk [vmem:[#allocation0] sm:$0x1] %vm13, %v12
    %s15 = scalar_lea.vmem [#allocation1], 2
    %v16 = vld [vmem:[%s15] sm:$0x1]
    %17 = vrot.lane.b32.xlu0 %v16, 64
    %v18 = vpop.permute.xlu0 %17
    %vm19 = vcmask 785920
    %20 = vst.msk [vmem:[#allocation0] sm:$0x1] %vm19, %v18
    %s21 = scalar_lea.vmem [#allocation1], 1
    %v22 = vld [vmem:[%s21] sm:$0x1]
    %23 = vrot.lane.b32.xlu0 %v22, 32
    %v24 = vpop.permute.xlu0 %23
    %vm25 = vcmask 523520
    %26 = vst.msk [vmem:[#allocation0] sm:$0x1] %vm25, %v24
    %s28 = sshllo.u32 0, 1
    %v30 = vld [vmem:[#allocation0] sm:%s28]
    %s31 = sshllo.u32 0, 1
    %32 = vst [vmem:[%s1] sm:%s31] %v30

// kernel: tile.14
$region0: #{tile.14}
  #allocation0 [shape = 's32[1]{0}', space=sflag, size = 0x4, scoped, tag = 'scoped memory for tile.14']
  %s0 = inlined_call_operand.vmem [shape: f32[2], index: 0, kind: input, shape index: {}]
  %s1 = inlined_call_operand.vmem [shape: f32[64,2], index: 1, kind: output, shape index: {}]
  // Predicated region
  $region2: #{tile.14} parent=0 // pred_check
    _
  $region3: #{tile.14} parent=0 // pred_check_branch
    %3 = sbr.rel (0) target = $region5
  $region4: #{tile.14} parent=0 // pred_region
    _
  $region5: #{tile.14} parent=0 // pred_fallthru
    _
  %v4 = vld [vmem:[%s0] ss:$0 sm:$0xff]
  %5 = vst [vmem:[%s1] sm:$0xff] %v4
  %s6 = scalar_lea.vmem %s1, 8
  %7 = vst [vmem:[%s6] sm:$0xff] %v4
  %s8 = scalar_lea.vmem %s1, 16
  %9 = vst [vmem:[%s8] sm:$0xff] %v4
  %s10 = scalar_lea.vmem %s1, 24
  %11 = vst [vmem:[%s10] sm:$0xff] %v4
  %s12 = scalar_lea.vmem %s1, 32
  %13 = vst [vmem:[%s12] sm:$0xff] %v4
  %s14 = scalar_lea.vmem %s1, 40
  %15 = vst [vmem:[%s14] sm:$0xff] %v4
  %s16 = scalar_lea.vmem %s1, 48
  %17 = vst [vmem:[%s16] sm:$0xff] %v4
  %s18 = scalar_lea.vmem %s1, 56
  %19 = vst [vmem:[%s18] sm:$0xff] %v4

// kernel: tile.15
$region0: #{tile.15}
  %s0 = inlined_call_operand.vmem [shape: f32[64,2], index: 0, kind: input, shape index: {}]
  %s1 = inlined_call_operand.vmem [shape: f32[1,128], index: 1, kind: output, shape index: {}]
  $region1: #{tile.15} parent=0
    #allocation0 [shape = 'u8[4096]{0}', space=vmem, size = 0x1000, scoped, tag = 'scoped mem for output reshape']
    %v2 = vld [vmem:[%s0] sm:$0x1]
    %vm3 = vcmask 15360
    %4 = vst.msk [vmem:[#allocation0] sm:$0x1] %vm3, %v2
    %s5 = scalar_lea.vmem %s0, 63
    %v6 = vld [vmem:[%s5] sm:$0x1]
    %7 = vrot.lane.b32.xlu0 %v6, 126
    %v8 = vpop.permute.xlu0 %7
    %vm9 = vcmask 1048560
    %10 = vst.msk [vmem:[#allocation0] sm:$0x1] %vm9, %v8
    %s11 = scalar_lea.vmem %s0, 62
    %v12 = vld [vmem:[%s11] sm:$0x1]
    %13 = vrot.lane.b32.xlu0 %v12, 124
    %v14 = vpop.permute.xlu0 %13
    %vm15 = vcmask 1032160
    %16 = vst.msk [vmem:[#allocation0] sm:$0x1] %vm15, %v14
    %s17 = scalar_lea.vmem %s0, 61
    %v18 = vld [vmem:[%s17] sm:$0x1]
    %19 = vrot.lane.b32.xlu0 %v18, 122
    %v20 = vpop.permute.xlu0 %19
    %vm21 = vcmask 1015760
    %22 = vst.msk [vmem:[#allocation0] sm:$0x1] %vm21, %v20
    %s23 = scalar_lea.vmem %s0, 60
    %v24 = vld [vmem:[%s23] sm:$0x1]
    %25 = vrot.lane.b32.xlu0 %v24, 120
    %v26 = vpop.permute.xlu0 %25
    %vm27 = vcmask 999360
    %28 = vst.msk [vmem:[#allocation0] sm:$0x1] %vm27, %v26
    %s29 = scalar_lea.vmem %s0, 59
    %v30 = vld [vmem:[%s29] sm:$0x1]
    %31 = vrot.lane.b32.xlu0 %v30, 118
    %v32 = vpop.permute.xlu0 %31
    %vm33 = vcmask 982960
    %34 = vst.msk [vmem:[#allocation0] sm:$0x1] %vm33, %v32
    %s35 = scalar_lea.vmem %s0, 58
    %v36 = vld [vmem:[%s35] sm:$0x1]
    %37 = vrot.lane.b32.xlu0 %v36, 116
    %v38 = vpop.permute.xlu0 %37
    %vm39 = vcmask 966560
    %40 = vst.msk [vmem:[#allocation0] sm:$0x1] %vm39, %v38
    %s41 = scalar_lea.vmem %s0, 57
    %v42 = vld [vmem:[%s41] sm:$0x1]
    %43 = vrot.lane.b32.xlu0 %v42, 114
    %v44 = vpop.permute.xlu0 %43
    %vm45 = vcmask 950160
    %46 = vst.msk [vmem:[#allocation0] sm:$0x1] %vm45, %v44
    %s47 = scalar_lea.vmem %s0, 56
    %v48 = vld [vmem:[%s47] sm:$0x1]
    %49 = vrot.lane.b32.xlu0 %v48, 112
    %v50 = vpop.permute.xlu0 %49
    %vm51 = vcmask 933760
    %52 = vst.msk [vmem:[#allocation0] sm:$0x1] %vm51, %v50
    %s53 = scalar_lea.vmem %s0, 55
    %v54 = vld [vmem:[%s53] sm:$0x1]
    %55 = vrot.lane.b32.xlu0 %v54, 110
    %v56 = vpop.permute.xlu0 %55
    %vm57 = vcmask 917360
    %58 = vst.msk [vmem:[#allocation0] sm:$0x1] %vm57, %v56
    %s59 = scalar_lea.vmem %s0, 54
    %v60 = vld [vmem:[%s59] sm:$0x1]
    %61 = vrot.lane.b32.xlu0 %v60, 108
    %v62 = vpop.permute.xlu0 %61
    %vm63 = vcmask 900960
    %64 = vst.msk [vmem:[#allocation0] sm:$0x1] %vm63, %v62
    %s65 = scalar_lea.vmem %s0, 53
    %v66 = vld [vmem:[%s65] sm:$0x1]
    %67 = vrot.lane.b32.xlu0 %v66, 106
    %v68 = vpop.permute.xlu0 %67
    %vm69 = vcmask 884560
    %70 = vst.msk [vmem:[#allocation0] sm:$0x1] %vm69, %v68
    %s71 = scalar_lea.vmem %s0, 52
    %v72 = vld [vmem:[%s71] sm:$0x1]
    %73 = vrot.lane.b32.xlu0 %v72, 104
    %v74 = vpop.permute.xlu0 %73
    %vm75 = vcmask 868160
    %76 = vst.msk [vmem:[#allocation0] sm:$0x1] %vm75, %v74
    %s77 = scalar_lea.vmem %s0, 51
    %v78 = vld [vmem:[%s77] sm:$0x1]
    %79 = vrot.lane.b32.xlu0 %v78, 102
    %v80 = vpop.permute.xlu0 %79
    %vm81 = vcmask 851760
    %82 = vst.msk [vmem:[#allocation0] sm:$0x1] %vm81, %v80
    %s83 = scalar_lea.vmem %s0, 50
    %v84 = vld [vmem:[%s83] sm:$0x1]
    %85 = vrot.lane.b32.xlu0 %v84, 100
    %v86 = vpop.permute.xlu0 %85
    %vm87 = vcmask 835360
    %88 = vst.msk [vmem:[#allocation0] sm:$0x1] %vm87, %v86
    %s89 = scalar_lea.vmem %s0, 49
    %v90 = vld [vmem:[%s89] sm:$0x1]
    %91 = vrot.lane.b32.xlu0 %v90, 98
    %v92 = vpop.permute.xlu0 %91
    %vm93 = vcmask 818960
    %94 = vst.msk [vmem:[#allocation0] sm:$0x1] %vm93, %v92
    %s95 = scalar_lea.vmem %s0, 48
    %v96 = vld [vmem:[%s95] sm:$0x1]
    %97 = vrot.lane.b32.xlu0 %v96, 96
    %v98 = vpop.permute.xlu0 %97
    %vm99 = vcmask 802560
    %100 = vst.msk [vmem:[#allocation0] sm:$0x1] %vm99, %v98
    %s101 = scalar_lea.vmem %s0, 47
    %v102 = vld [vmem:[%s101] sm:$0x1]
    %103 = vrot.lane.b32.xlu0 %v102, 94
    %v104 = vpop.permute.xlu0 %103
    %vm105 = vcmask 786160
    %106 = vst.msk [vmem:[#allocation0] sm:$0x1] %vm105, %v104
    %s107 = scalar_lea.vmem %s0, 46
    %v108 = vld [vmem:[%s107] sm:$0x1]
    %109 = vrot.lane.b32.xlu0 %v108, 92
    %v110 = vpop.permute.xlu0 %109
    %vm111 = vcmask 769760
    %112 = vst.msk [vmem:[#allocation0] sm:$0x1] %vm111, %v110
    %s113 = scalar_lea.vmem %s0, 45
    %v114 = vld [vmem:[%s113] sm:$0x1]
    %115 = vrot.lane.b32.xlu0 %v114, 90
    %v116 = vpop.permute.xlu0 %115
    %vm117 = vcmask 753360
    %118 = vst.msk [vmem:[#allocation0] sm:$0x1] %vm117, %v116
    %s119 = scalar_lea.vmem %s0, 44
    %v120 = vld [vmem:[%s119] sm:$0x1]
    %121 = vrot.lane.b32.xlu0 %v120, 88
    %v122 = vpop.permute.xlu0 %121
    %vm123 = vcmask 736960
    %124 = vst.msk [vmem:[#allocation0] sm:$0x1] %vm123, %v122
    %s125 = scalar_lea.vmem %s0, 43
    %v126 = vld [vmem:[%s125] sm:$0x1]
    %127 = vrot.lane.b32.xlu0 %v126, 86
    %v128 = vpop.permute.xlu0 %127
    %vm129 = vcmask 720560
    %130 = vst.msk [vmem:[#allocation0] sm:$0x1] %vm129, %v128
    %s131 = scalar_lea.vmem %s0, 42
    %v132 = vld [vmem:[%s131] sm:$0x1]
    %133 = vrot.lane.b32.xlu0 %v132, 84
    %v134 = vpop.permute.xlu0 %133
    %vm135 = vcmask 704160
    %136 = vst.msk [vmem:[#allocation0] sm:$0x1] %vm135, %v134
    %s137 = scalar_lea.vmem %s0, 41
    %v138 = vld [vmem:[%s137] sm:$0x1]
    %139 = vrot.lane.b32.xlu0 %v138, 82
    %v140 = vpop.permute.xlu0 %139
    %vm141 = vcmask 687760
    %142 = vst.msk [vmem:[#allocation0] sm:$0x1] %vm141, %v140
    %s143 = scalar_lea.vmem %s0, 40
    %v144 = vld [vmem:[%s143] sm:$0x1]
    %145 = vrot.lane.b32.xlu0 %v144, 80
    %v146 = vpop.permute.xlu0 %145
    %vm147 = vcmask 671360
    %148 = vst.msk [vmem:[#allocation0] sm:$0x1] %vm147, %v146
    %s149 = scalar_lea.vmem %s0, 39
    %v150 = vld [vmem:[%s149] sm:$0x1]
    %151 = vrot.lane.b32.xlu0 %v150, 78
    %v152 = vpop.permute.xlu0 %151
    %vm153 = vcmask 654960
    %154 = vst.msk [vmem:[#allocation0] sm:$0x1] %vm153, %v152
    %s155 = scalar_lea.vmem %s0, 38
    %v156 = vld [vmem:[%s155] sm:$0x1]
    %157 = vrot.lane.b32.xlu0 %v156, 76
    %v158 = vpop.permute.xlu0 %157
    %vm159 = vcmask 638560
    %160 = vst.msk [vmem:[#allocation0] sm:$0x1] %vm159, %v158
    %s161 = scalar_lea.vmem %s0, 37
    %v162 = vld [vmem:[%s161] sm:$0x1]
    %163 = vrot.lane.b32.xlu0 %v162, 74
    %v164 = vpop.permute.xlu0 %163
    %vm165 = vcmask 622160
    %166 = vst.msk [vmem:[#allocation0] sm:$0x1] %vm165, %v164
    %s167 = scalar_lea.vmem %s0, 36
    %v168 = vld [vmem:[%s167] sm:$0x1]
    %169 = vrot.lane.b32.xlu0 %v168, 72
    %v170 = vpop.permute.xlu0 %169
    %vm171 = vcmask 605760
    %172 = vst.msk [vmem:[#allocation0] sm:$0x1] %vm171, %v170
    %s173 = scalar_lea.vmem %s0, 35
    %v174 = vld [vmem:[%s173] sm:$0x1]
    %175 = vrot.lane.b32.xlu0 %v174, 70
    %v176 = vpop.permute.xlu0 %175
    %vm177 = vcmask 589360
    %178 = vst.msk [vmem:[#allocation0] sm:$0x1] %vm177, %v176
    %s179 = scalar_lea.vmem %s0, 34
    %v180 = vld [vmem:[%s179] sm:$0x1]
    %181 = vrot.lane.b32.xlu0 %v180, 68
    %v182 = vpop.permute.xlu0 %181
    %vm183 = vcmask 572960
    %184 = vst.msk [vmem:[#allocation0] sm:$0x1] %vm183, %v182
    %s185 = scalar_lea.vmem %s0, 33
    %v186 = vld [vmem:[%s185] sm:$0x1]
    %187 = vrot.lane.b32.xlu0 %v186, 66
    %v188 = vpop.permute.xlu0 %187
    %vm189 = vcmask 556560
    %190 = vst.msk [vmem:[#allocation0] sm:$0x1] %vm189, %v188
    %s191 = scalar_lea.vmem %s0, 32
    %v192 = vld [vmem:[%s191] sm:$0x1]
    %193 = vrot.lane.b32.xlu0 %v192, 64
    %v194 = vpop.permute.xlu0 %193
    %vm195 = vcmask 540160
    %196 = vst.msk [vmem:[#allocation0] sm:$0x1] %vm195, %v194
    %s197 = scalar_lea.vmem %s0, 31
    %v198 = vld [vmem:[%s197] sm:$0x1]
    %199 = vrot.lane.b32.xlu0 %v198, 62
    %v200 = vpop.permute.xlu0 %199
    %vm201 = vcmask 523760
    %202 = vst.msk [vmem:[#allocation0] sm:$0x1] %vm201, %v200
    %s203 = scalar_lea.vmem %s0, 30
    %v204 = vld [vmem:[%s203] sm:$0x1]
    %205 = vrot.lane.b32.xlu0 %v204, 60
    %v206 = vpop.permute.xlu0 %205
    %vm207 = vcmask 507360
    %208 = vst.msk [vmem:[#allocation0] sm:$0x1] %vm207, %v206
    %s209 = scalar_lea.vmem %s0, 29
    %v210 = vld [vmem:[%s209] sm:$0x1]
    %211 = vrot.lane.b32.xlu0 %v210, 58
    %v212 = vpop.permute.xlu0 %211
    %vm213 = vcmask 490960
    %214 = vst.msk [vmem:[#allocation0] sm:$0x1] %vm213, %v212
    %s215 = scalar_lea.vmem %s0, 28
    %v216 = vld [vmem:[%s215] sm:$0x1]
    %217 = vrot.lane.b32.xlu0 %v216, 56
    %v218 = vpop.permute.xlu0 %217
    %vm219 = vcmask 474560
    %220 = vst.msk [vmem:[#allocation0] sm:$0x1] %vm219, %v218
    %s221 = scalar_lea.vmem %s0, 27
    %v222 = vld [vmem:[%s221] sm:$0x1]
    %223 = vrot.lane.b32.xlu0 %v222, 54
    %v224 = vpop.permute.xlu0 %223
    %vm225 = vcmask 458160
    %226 = vst.msk [vmem:[#allocation0] sm:$0x1] %vm225, %v224
    %s227 = scalar_lea.vmem %s0, 26
    %v228 = vld [vmem:[%s227] sm:$0x1]
    %229 = vrot.lane.b32.xlu0 %v228, 52
    %v230 = vpop.permute.xlu0 %229
    %vm231 = vcmask 441760
    %232 = vst.msk [vmem:[#allocation0] sm:$0x1] %vm231, %v230
    %s233 = scalar_lea.vmem %s0, 25
    %v234 = vld [vmem:[%s233] sm:$0x1]
    %235 = vrot.lane.b32.xlu0 %v234, 50
    %v236 = vpop.permute.xlu0 %235
    %vm237 = vcmask 425360
    %238 = vst.msk [vmem:[#allocation0] sm:$0x1] %vm237, %v236
    %s239 = scalar_lea.vmem %s0, 24
    %v240 = vld [vmem:[%s239] sm:$0x1]
    %241 = vrot.lane.b32.xlu0 %v240, 48
    %v242 = vpop.permute.xlu0 %241
    %vm243 = vcmask 408960
    %244 = vst.msk [vmem:[#allocation0] sm:$0x1] %vm243, %v242
    %s245 = scalar_lea.vmem %s0, 23
    %v246 = vld [vmem:[%s245] sm:$0x1]
    %247 = vrot.lane.b32.xlu0 %v246, 46
    %v248 = vpop.permute.xlu0 %247
    %vm249 = vcmask 392560
    %250 = vst.msk [vmem:[#allocation0] sm:$0x1] %vm249, %v248
    %s251 = scalar_lea.vmem %s0, 22
    %v252 = vld [vmem:[%s251] sm:$0x1]
    %253 = vrot.lane.b32.xlu0 %v252, 44
    %v254 = vpop.permute.xlu0 %253
    %vm255 = vcmask 376160
    %256 = vst.msk [vmem:[#allocation0] sm:$0x1] %vm255, %v254
    %s257 = scalar_lea.vmem %s0, 21
    %v258 = vld [vmem:[%s257] sm:$0x1]
    %259 = vrot.lane.b32.xlu0 %v258, 42
    %v260 = vpop.permute.xlu0 %259
    %vm261 = vcmask 359760
    %262 = vst.msk [vmem:[#allocation0] sm:$0x1] %vm261, %v260
    %s263 = scalar_lea.vmem %s0, 20
    %v264 = vld [vmem:[%s263] sm:$0x1]
    %265 = vrot.lane.b32.xlu0 %v264, 40
    %v266 = vpop.permute.xlu0 %265
    %vm267 = vcmask 343360
    %268 = vst.msk [vmem:[#allocation0] sm:$0x1] %vm267, %v266
    %s269 = scalar_lea.vmem %s0, 19
    %v270 = vld [vmem:[%s269] sm:$0x1]
    %271 = vrot.lane.b32.xlu0 %v270, 38
    %v272 = vpop.permute.xlu0 %271
    %vm273 = vcmask 326960
    %274 = vst.msk [vmem:[#allocation0] sm:$0x1] %vm273, %v272
    %s275 = scalar_lea.vmem %s0, 18
    %v276 = vld [vmem:[%s275] sm:$0x1]
    %277 = vrot.lane.b32.xlu0 %v276, 36
    %v278 = vpop.permute.xlu0 %277
    %vm279 = vcmask 310560
    %280 = vst.msk [vmem:[#allocation0] sm:$0x1] %vm279, %v278
    %s281 = scalar_lea.vmem %s0, 17
    %v282 = vld [vmem:[%s281] sm:$0x1]
    %283 = vrot.lane.b32.xlu0 %v282, 34
    %v284 = vpop.permute.xlu0 %283
    %vm285 = vcmask 294160
    %286 = vst.msk [vmem:[#allocation0] sm:$0x1] %vm285, %v284
    %s287 = scalar_lea.vmem %s0, 16
    %v288 = vld [vmem:[%s287] sm:$0x1]
    %289 = vrot.lane.b32.xlu0 %v288, 32
    %v290 = vpop.permute.xlu0 %289
    %vm291 = vcmask 277760
    %292 = vst.msk [vmem:[#allocation0] sm:$0x1] %vm291, %v290
    %s293 = scalar_lea.vmem %s0, 15
    %v294 = vld [vmem:[%s293] sm:$0x1]
    %295 = vrot.lane.b32.xlu0 %v294, 30
    %v296 = vpop.permute.xlu0 %295
    %vm297 = vcmask 261360
    %298 = vst.msk [vmem:[#allocation0] sm:$0x1] %vm297, %v296
    %s299 = scalar_lea.vmem %s0, 14
    %v300 = vld [vmem:[%s299] sm:$0x1]
    %301 = vrot.lane.b32.xlu0 %v300, 28
    %v302 = vpop.permute.xlu0 %301
    %vm303 = vcmask 244960
    %304 = vst.msk [vmem:[#allocation0] sm:$0x1] %vm303, %v302
    %s305 = scalar_lea.vmem %s0, 13
    %v306 = vld [vmem:[%s305] sm:$0x1]
    %307 = vrot.lane.b32.xlu0 %v306, 26
    %v308 = vpop.permute.xlu0 %307
    %vm309 = vcmask 228560
    %310 = vst.msk [vmem:[#allocation0] sm:$0x1] %vm309, %v308
    %s311 = scalar_lea.vmem %s0, 12
    %v312 = vld [vmem:[%s311] sm:$0x1]
    %313 = vrot.lane.b32.xlu0 %v312, 24
    %v314 = vpop.permute.xlu0 %313
    %vm315 = vcmask 212160
    %316 = vst.msk [vmem:[#allocation0] sm:$0x1] %vm315, %v314
    %s317 = scalar_lea.vmem %s0, 11
    %v318 = vld [vmem:[%s317] sm:$0x1]
    %319 = vrot.lane.b32.xlu0 %v318, 22
    %v320 = vpop.permute.xlu0 %319
    %vm321 = vcmask 195760
    %322 = vst.msk [vmem:[#allocation0] sm:$0x1] %vm321, %v320
    %s323 = scalar_lea.vmem %s0, 10
    %v324 = vld [vmem:[%s323] sm:$0x1]
    %325 = vrot.lane.b32.xlu0 %v324, 20
    %v326 = vpop.permute.xlu0 %325
    %vm327 = vcmask 179360
    %328 = vst.msk [vmem:[#allocation0] sm:$0x1] %vm327, %v326
    %s329 = scalar_lea.vmem %s0, 9
    %v330 = vld [vmem:[%s329] sm:$0x1]
    %331 = vrot.lane.b32.xlu0 %v330, 18
    %v332 = vpop.permute.xlu0 %331
    %vm333 = vcmask 162960
    %334 = vst.msk [vmem:[#allocation0] sm:$0x1] %vm333, %v332
    %s335 = scalar_lea.vmem %s0, 8
    %v336 = vld [vmem:[%s335] sm:$0x1]
    %337 = vrot.lane.b32.xlu0 %v336, 16
    %v338 = vpop.permute.xlu0 %337
    %vm339 = vcmask 146560
    %340 = vst.msk [vmem:[#allocation0] sm:$0x1] %vm339, %v338
    %s341 = scalar_lea.vmem %s0, 7
    %v342 = vld [vmem:[%s341] sm:$0x1]
    %343 = vrot.lane.b32.xlu0 %v342, 14
    %v344 = vpop.permute.xlu0 %343
    %vm345 = vcmask 130160
    %346 = vst.msk [vmem:[#allocation0] sm:$0x1] %vm345, %v344
    %s347 = scalar_lea.vmem %s0, 6
    %v348 = vld [vmem:[%s347] sm:$0x1]
    %349 = vrot.lane.b32.xlu0 %v348, 12
    %v350 = vpop.permute.xlu0 %349
    %vm351 = vcmask 113760
    %352 = vst.msk [vmem:[#allocation0] sm:$0x1] %vm351, %v350
    %s353 = scalar_lea.vmem %s0, 5
    %v354 = vld [vmem:[%s353] sm:$0x1]
    %355 = vrot.lane.b32.xlu0 %v354, 10
    %v356 = vpop.permute.xlu0 %355
    %vm357 = vcmask 97360
    %358 = vst.msk [vmem:[#allocation0] sm:$0x1] %vm357, %v356
    %s359 = scalar_lea.vmem %s0, 4
    %v360 = vld [vmem:[%s359] sm:$0x1]
    %361 = vrot.lane.b32.xlu0 %v360, 8
    %v362 = vpop.permute.xlu0 %361
    %vm363 = vcmask 80960
    %364 = vst.msk [vmem:[#allocation0] sm:$0x1] %vm363, %v362
    %s365 = scalar_lea.vmem %s0, 3
    %v366 = vld [vmem:[%s365] sm:$0x1]
    %367 = vrot.lane.b32.xlu0 %v366, 6
    %v368 = vpop.permute.xlu0 %367
    %vm369 = vcmask 64560
    %370 = vst.msk [vmem:[#allocation0] sm:$0x1] %vm369, %v368
    %s371 = scalar_lea.vmem %s0, 2
    %v372 = vld [vmem:[%s371] sm:$0x1]
    %373 = vrot.lane.b32.xlu0 %v372, 4
    %v374 = vpop.permute.xlu0 %373
    %vm375 = vcmask 48160
    %376 = vst.msk [vmem:[#allocation0] sm:$0x1] %vm375, %v374
    %s377 = scalar_lea.vmem %s0, 1
    %v378 = vld [vmem:[%s377] sm:$0x1]
    %379 = vrot.lane.b32.xlu0 %v378, 2
    %v380 = vpop.permute.xlu0 %379
    %vm381 = vcmask 31760
    %382 = vst.msk [vmem:[#allocation0] sm:$0x1] %vm381, %v380
    %s384 = sshllo.u32 0, 1
    %v386 = vld [vmem:[#allocation0] sm:%s384]
    %s387 = sshllo.u32 0, 1
    %388 = vst [vmem:[%s1] sm:%s387] %v386

// kernel: sinusoidal_positional_embedding.1
$region0: #{sinusoidal_positional_embedding.1}
  #allocation0 [shape = 'u32[]', space=smem, size = 0x4, offset = 0x4, fixed_abs, tag = 'smem constant byte address 0x4 - core index']
  #allocation1 [shape = 'u32[144,128]{1,0:T(1,128)}', space=vmem, size = 0x12000, scoped, tag = 'internal scratch']
  %s0 = inlined_call_operand.vmem [shape: f32[64,4], index: 0, kind: input, shape index: {}]
  %s1 = inlined_call_operand.vmem [shape: f32[4,128], index: 1, kind: input, shape index: {}]
  %s2 = inlined_call_operand.vmem [shape: f32[1,128], index: 2, kind: input, shape index: {}]
  %s3 = inlined_call_operand.vmem [shape: f32[1,128], index: 3, kind: input, shape index: {}]
  %s4 = inlined_call_operand.vmem [shape: f32[64,128], index: 4, kind: output, shape index: {}]
  %s5 = sld [smem:[#allocation0]]
  $region26: #{sinusoidal_positional_embedding.1} parent=0
    _
  %s7 = ssub.s32 1, %s5
  %s8 = scalar_select 0, %s7, %s5
  // Predicated region
  $region2: #{sinusoidal_positional_embedding.1} parent=0 // pred_check
    _
  $region3: #{sinusoidal_positional_embedding.1} parent=0 // pred_check_branch
    %10 = sbr.rel (0) target = $region5
  $region4: #{sinusoidal_positional_embedding.1} parent=0 // pred_region
    _
  $region5: #{sinusoidal_positional_embedding.1} parent=0 // pred_fallthru
    _
  // Predicated region
  $region6: #{sinusoidal_positional_embedding.1} parent=0 // pred_check
    _
  $region7: #{sinusoidal_positional_embedding.1} parent=0 // pred_check_branch
    %12 = sbr.rel (0) target = $region9
  $region8: #{sinusoidal_positional_embedding.1} parent=0 // pred_region
    _
  $region9: #{sinusoidal_positional_embedding.1} parent=0 // pred_fallthru
    _
  // Predicated region
  $region10: #{sinusoidal_positional_embedding.1} parent=0 // pred_check
    _
  $region11: #{sinusoidal_positional_embedding.1} parent=0 // pred_check_branch
    %14 = sbr.rel (0) target = $region13
  $region12: #{sinusoidal_positional_embedding.1} parent=0 // pred_region
    _
  $region13: #{sinusoidal_positional_embedding.1} parent=0 // pred_fallthru
    _
  // Predicated region
  $region14: #{sinusoidal_positional_embedding.1} parent=0 // pred_check
    _
  $region15: #{sinusoidal_positional_embedding.1} parent=0 // pred_check_branch
    %16 = sbr.rel (0) target = $region17
  $region16: #{sinusoidal_positional_embedding.1} parent=0 // pred_region
    _
  $region17: #{sinusoidal_positional_embedding.1} parent=0 // pred_fallthru
    _
  %v17 = vld [vmem:[%s0] sm:$0xff]
  %v18 = vld [vmem:[%s0 + $0x8] sm:$0xff]
  %v19 = vld [vmem:[%s0 + $0x10] sm:$0xff]
  %v20 = vld [vmem:[%s0 + $0x18] sm:$0xff]
  %v21 = vld [vmem:[%s0 + $0x20] sm:$0xff]
  %v22 = vld [vmem:[%s0 + $0x28] sm:$0xff]
  %v23 = vld [vmem:[%s0 + $0x30] sm:$0xff]
  %v24 = vld [vmem:[%s0 + $0x38] sm:$0xff]
  %v25 = vld [vmem:[%s1] sm:$0xf]
  %vm26 = vcmask 31744
  %v28 = vsel %vm26, %v17, 0
  %v31 = vsel %vm26, %v18, 0
  %v34 = vsel %vm26, %v19, 0
  %v37 = vsel %vm26, %v20, 0
  %v40 = vsel %vm26, %v21, 0
  %v43 = vsel %vm26, %v22, 0
  %v46 = vsel %vm26, %v23, 0
  %v49 = vsel %vm26, %v24, 0
  %vm51 = vcmask 1043456
  %v53 = vsel %vm51, %v25, 0
  %55 = vmatprep.subr.mxu0 0.0
  %v56 = vand.u32 %v53, 4294901760
  %57 = vmatpush1.msra.mxu0 %v56
  %58 = vmatprep.subr.mxu0 0.0
  %59 = vmatpush1.msra.mxu0 0.0
  %60 = vmatprep.subr.mxu0 0.0
  %61 = vmatpush1.msra.mxu0 0.0
  %62 = vmatprep.subr.mxu0 0.0
  %63 = vmatpush1.msra.mxu0 0.0
  %64 = vmatprep.subr.mxu0 0.0
  %65 = vmatpush1.msra.mxu0 0.0
  %66 = vmatprep.subr.mxu0 0.0
  %67 = vmatpush1.msra.mxu0 0.0
  %68 = vmatprep.subr.mxu0 0.0
  %69 = vmatpush1.msra.mxu0 0.0
  %70 = vmatprep.subr.mxu0 0.0
  %71 = vmatpush1.msra.mxu0 0.0
  %72 = vmatprep.subr.mxu0 0.0
  %73 = vmatpush1.msra.mxu0 0.0
  %74 = vmatprep.subr.mxu0 0.0
  %75 = vmatpush1.msra.mxu0 0.0
  %76 = vmatprep.subr.mxu0 0.0
  %77 = vmatpush1.msra.mxu0 0.0
  %78 = vmatprep.subr.mxu0 0.0
  %79 = vmatpush1.msra.mxu0 0.0
  %80 = vmatprep.subr.mxu0 0.0
  %81 = vmatpush1.msra.mxu0 0.0
  %82 = vmatprep.subr.mxu0 0.0
  %83 = vmatpush1.msra.mxu0 0.0
  %84 = vmatprep.subr.mxu0 0.0
  %85 = vmatpush1.msra.mxu0 0.0
  %86 = vmatprep.subr.mxu0 0.0
  %87 = vmatpush1.msra.mxu0 0.0
  %88 = vmatprep.subr.mxu0 0.0
  %89 = vmatpush1.msra.mxu0 0.0
  %90 = vmatprep.subr.mxu0 0.0
  %91 = vmatpush1.msra.mxu0 0.0
  %92 = vmatprep.subr.mxu0 0.0
  %93 = vmatpush1.msra.mxu0 0.0
  %94 = vmatprep.subr.mxu0 0.0
  %95 = vmatpush1.msra.mxu0 0.0
  %96 = vmatprep.subr.mxu0 0.0
  %97 = vmatpush1.msra.mxu0 0.0
  %98 = vmatprep.subr.mxu0 0.0
  %99 = vmatpush1.msra.mxu0 0.0
  %100 = vmatprep.subr.mxu0 0.0
  %101 = vmatpush1.msra.mxu0 0.0
  %102 = vmatprep.subr.mxu0 0.0
  %103 = vmatpush1.msra.mxu0 0.0
  %104 = vmatprep.subr.mxu0 0.0
  %105 = vmatpush1.msra.mxu0 0.0
  %106 = vmatprep.subr.mxu0 0.0
  %107 = vmatpush1.msra.mxu0 0.0
  %108 = vmatprep.subr.mxu0 0.0
  %109 = vmatpush1.msra.mxu0 0.0
  %110 = vmatprep.subr.mxu0 0.0
  %111 = vmatpush1.msra.mxu0 0.0
  %112 = vmatprep.subr.mxu0 0.0
  %113 = vmatpush1.msra.mxu0 0.0
  %114 = vmatprep.subr.mxu0 0.0
  %115 = vmatpush1.msra.mxu0 0.0
  %116 = vmatprep.subr.mxu0 0.0
  %117 = vmatpush1.msra.mxu0 0.0
  %118 = vmatprep.subr.mxu0 0.0
  %119 = vmatpush1.msra.mxu0 0.0
  %120 = vmatprep.mubr.f32.mxu0 0.0
  %v121 = vand.u32 %v28, 4294901760
  %v122 = vsub.f32 %v28, %v121
  %v123 = vand.u32 %v122, 4294901760
  %v124 = vsub.f32 %v122, %v123
  %v125 = vand.u32 %v124, 4294901760
  %126 = vmatmul.mubr.f32.gmra.mrb[0].mxu0 %v125
  %v127 = vpop.f32.mrb[0].mxu0
  %v128 = vadd.f32 0.0, %v127
  %v129 = vpop.f32.mrb[0].mxu0
  %130 = vmatprep.mubr.f32.mxu0 0.0
  %v131 = vand.u32 %v31, 4294901760
  %v132 = vsub.f32 %v31, %v131
  %v133 = vand.u32 %v132, 4294901760
  %v134 = vsub.f32 %v132, %v133
  %v135 = vand.u32 %v134, 4294901760
  %136 = vmatmul.mubr.f32.gmra.mrb[0].mxu0 %v135
  %v137 = vpop.f32.mrb[0].mxu0
  %v138 = vadd.f32 0.0, %v137
  %v139 = vpop.f32.mrb[0].mxu0
  %140 = vmatprep.mubr.f32.mxu0 0.0
  %v141 = vand.u32 %v34, 4294901760
  %v142 = vsub.f32 %v34, %v141
  %v143 = vand.u32 %v142, 4294901760
  %v144 = vsub.f32 %v142, %v143
  %v145 = vand.u32 %v144, 4294901760
  %146 = vmatmul.mubr.f32.gmra.mrb[0].mxu0 %v145
  %v147 = vpop.f32.mrb[0].mxu0
  %v148 = vadd.f32 0.0, %v147
  %v149 = vpop.f32.mrb[0].mxu0
  %150 = vmatprep.mubr.f32.mxu0 0.0
  %v151 = vand.u32 %v37, 4294901760
  %v152 = vsub.f32 %v37, %v151
  %v153 = vand.u32 %v152, 4294901760
  %v154 = vsub.f32 %v152, %v153
  %v155 = vand.u32 %v154, 4294901760
  %156 = vmatmul.mubr.f32.gmra.mrb[0].mxu0 %v155
  %v157 = vpop.f32.mrb[0].mxu0
  %v158 = vadd.f32 0.0, %v157
  %v159 = vpop.f32.mrb[0].mxu0
  %160 = vmatprep.mubr.f32.mxu0 0.0
  %v161 = vand.u32 %v40, 4294901760
  %v162 = vsub.f32 %v40, %v161
  %v163 = vand.u32 %v162, 4294901760
  %v164 = vsub.f32 %v162, %v163
  %v165 = vand.u32 %v164, 4294901760
  %166 = vmatmul.mubr.f32.gmra.mrb[0].mxu0 %v165
  %v167 = vpop.f32.mrb[0].mxu0
  %v168 = vadd.f32 0.0, %v167
  %v169 = vpop.f32.mrb[0].mxu0
  %170 = vmatprep.mubr.f32.mxu0 0.0
  %v171 = vand.u32 %v43, 4294901760
  %v172 = vsub.f32 %v43, %v171
  %v173 = vand.u32 %v172, 4294901760
  %v174 = vsub.f32 %v172, %v173
  %v175 = vand.u32 %v174, 4294901760
  %176 = vmatmul.mubr.f32.gmra.mrb[0].mxu0 %v175
  %v177 = vpop.f32.mrb[0].mxu0
  %v178 = vadd.f32 0.0, %v177
  %v179 = vpop.f32.mrb[0].mxu0
  %180 = vmatprep.mubr.f32.mxu0 0.0
  %v181 = vand.u32 %v46, 4294901760
  %v182 = vsub.f32 %v46, %v181
  %v183 = vand.u32 %v182, 4294901760
  %v184 = vsub.f32 %v182, %v183
  %v185 = vand.u32 %v184, 4294901760
  %186 = vmatmul.mubr.f32.gmra.mrb[0].mxu0 %v185
  %v187 = vpop.f32.mrb[0].mxu0
  %v188 = vadd.f32 0.0, %v187
  %v189 = vpop.f32.mrb[0].mxu0
  %190 = vmatprep.mubr.f32.mxu0 0.0
  %v191 = vand.u32 %v49, 4294901760
  %v192 = vsub.f32 %v49, %v191
  %v193 = vand.u32 %v192, 4294901760
  %v194 = vsub.f32 %v192, %v193
  %v195 = vand.u32 %v194, 4294901760
  %196 = vmatmul.mubr.f32.gmra.mrb[0].mxu0 %v195
  %v197 = vpop.f32.mrb[0].mxu0
  %v198 = vadd.f32 0.0, %v197
  %v199 = vpop.f32.mrb[0].mxu0
  %200 = vdwg.mxu0
  %201 = vmatprep.subr.mxu0 0.0
  %v202 = vand.u32 %v53, 4294901760
  %v203 = vsub.f32 %v53, %v202
  %v204 = vand.u32 %v203, 4294901760
  %v205 = vsub.f32 %v203, %v204
  %v206 = vand.u32 %v205, 4294901760
  %207 = vmatpush1.msra.mxu0 %v206
  %208 = vmatprep.subr.mxu0 0.0
  %209 = vmatpush1.msra.mxu0 0.0
  %210 = vmatprep.subr.mxu0 0.0
  %211 = vmatpush1.msra.mxu0 0.0
  %212 = vmatprep.subr.mxu0 0.0
  %213 = vmatpush1.msra.mxu0 0.0
  %214 = vmatprep.subr.mxu0 0.0
  %215 = vmatpush1.msra.mxu0 0.0
  %216 = vmatprep.subr.mxu0 0.0
  %217 = vmatpush1.msra.mxu0 0.0
  %218 = vmatprep.subr.mxu0 0.0
  %219 = vmatpush1.msra.mxu0 0.0
  %220 = vmatprep.subr.mxu0 0.0
  %221 = vmatpush1.msra.mxu0 0.0
  %222 = vmatprep.subr.mxu0 0.0
  %223 = vmatpush1.msra.mxu0 0.0
  %224 = vmatprep.subr.mxu0 0.0
  %225 = vmatpush1.msra.mxu0 0.0
  %226 = vmatprep.subr.mxu0 0.0
  %227 = vmatpush1.msra.mxu0 0.0
  %228 = vmatprep.subr.mxu0 0.0
  %229 = vmatpush1.msra.mxu0 0.0
  %230 = vmatprep.subr.mxu0 0.0
  %231 = vmatpush1.msra.mxu0 0.0
  %232 = vmatprep.subr.mxu0 0.0
  %233 = vmatpush1.msra.mxu0 0.0
  %234 = vmatprep.subr.mxu0 0.0
  %235 = vmatpush1.msra.mxu0 0.0
  %236 = vmatprep.subr.mxu0 0.0
  %237 = vmatpush1.msra.mxu0 0.0
  %238 = vmatprep.subr.mxu0 0.0
  %239 = vmatpush1.msra.mxu0 0.0
  %240 = vmatprep.subr.mxu0 0.0
  %241 = vmatpush1.msra.mxu0 0.0
  %242 = vmatprep.subr.mxu0 0.0
  %243 = vmatpush1.msra.mxu0 0.0
  %244 = vmatprep.subr.mxu0 0.0
  %245 = vmatpush1.msra.mxu0 0.0
  %246 = vmatprep.subr.mxu0 0.0
  %247 = vmatpush1.msra.mxu0 0.0
  %248 = vmatprep.subr.mxu0 0.0
  %249 = vmatpush1.msra.mxu0 0.0
  %250 = vmatprep.subr.mxu0 0.0
  %251 = vmatpush1.msra.mxu0 0.0
  %252 = vmatprep.subr.mxu0 0.0
  %253 = vmatpush1.msra.mxu0 0.0
  %254 = vmatprep.subr.mxu0 0.0
  %255 = vmatpush1.msra.mxu0 0.0
  %256 = vmatprep.subr.mxu0 0.0
  %257 = vmatpush1.msra.mxu0 0.0
  %258 = vmatprep.subr.mxu0 0.0
  %259 = vmatpush1.msra.mxu0 0.0
  %260 = vmatprep.subr.mxu0 0.0
  %261 = vmatpush1.msra.mxu0 0.0
  %262 = vmatprep.subr.mxu0 0.0
  %263 = vmatpush1.msra.mxu0 0.0
  %264 = vmatprep.subr.mxu0 0.0
  %265 = vmatpush1.msra.mxu0 0.0
  %266 = vmatprep.subr.mxu0 0.0
  %267 = vmatpush1.msra.mxu0 0.0
  %268 = vmatprep.subr.mxu0 0.0
  %269 = vmatpush1.msra.mxu0 0.0
  %270 = vmatprep.mubr.f32.mxu0 0.0
  %v271 = vand.u32 %v28, 4294901760
  %272 = vmatmul.mubr.f32.gmra.mrb[0].mxu0 %v271
  %v273 = vpop.f32.mrb[0].mxu0
  %v274 = vadd.f32 %v128, %v273
  %v275 = vpop.f32.mrb[0].mxu0
  %276 = vmatprep.mubr.f32.mxu0 0.0
  %v277 = vand.u32 %v31, 4294901760
  %278 = vmatmul.mubr.f32.gmra.mrb[0].mxu0 %v277
  %v279 = vpop.f32.mrb[0].mxu0
  %v280 = vadd.f32 %v138, %v279
  %v281 = vpop.f32.mrb[0].mxu0
  %282 = vmatprep.mubr.f32.mxu0 0.0
  %v283 = vand.u32 %v34, 4294901760
  %284 = vmatmul.mubr.f32.gmra.mrb[0].mxu0 %v283
  %v285 = vpop.f32.mrb[0].mxu0
  %v286 = vadd.f32 %v148, %v285
  %v287 = vpop.f32.mrb[0].mxu0
  %288 = vmatprep.mubr.f32.mxu0 0.0
  %v289 = vand.u32 %v37, 4294901760
  %290 = vmatmul.mubr.f32.gmra.mrb[0].mxu0 %v289
  %v291 = vpop.f32.mrb[0].mxu0
  %v292 = vadd.f32 %v158, %v291
  %v293 = vpop.f32.mrb[0].mxu0
  %294 = vmatprep.mubr.f32.mxu0 0.0
  %v295 = vand.u32 %v40, 4294901760
  %296 = vmatmul.mubr.f32.gmra.mrb[0].mxu0 %v295
  %v297 = vpop.f32.mrb[0].mxu0
  %v298 = vadd.f32 %v168, %v297
  %v299 = vpop.f32.mrb[0].mxu0
  %300 = vmatprep.mubr.f32.mxu0 0.0
  %v301 = vand.u32 %v43, 4294901760
  %302 = vmatmul.mubr.f32.gmra.mrb[0].mxu0 %v301
  %v303 = vpop.f32.mrb[0].mxu0
  %v304 = vadd.f32 %v178, %v303
  %v305 = vpop.f32.mrb[0].mxu0
  %306 = vmatprep.mubr.f32.mxu0 0.0
  %v307 = vand.u32 %v46, 4294901760
  %308 = vmatmul.mubr.f32.gmra.mrb[0].mxu0 %v307
  %v309 = vpop.f32.mrb[0].mxu0
  %v310 = vadd.f32 %v188, %v309
  %v311 = vpop.f32.mrb[0].mxu0
  %312 = vmatprep.mubr.f32.mxu0 0.0
  %v313 = vand.u32 %v49, 4294901760
  %314 = vmatmul.mubr.f32.gmra.mrb[0].mxu0 %v313
  %v315 = vpop.f32.mrb[0].mxu0
  %v316 = vadd.f32 %v198, %v315
  %v317 = vpop.f32.mrb[0].mxu0
  %318 = vdwg.mxu0
  %319 = vmatprep.subr.mxu0 0.0
  %v320 = vand.u32 %v53, 4294901760
  %v321 = vsub.f32 %v53, %v320
  %322 = vmatpush1.msra.mxu0 %v321
  %323 = vmatprep.subr.mxu0 0.0
  %324 = vmatpush1.msra.mxu0 0.0
  %325 = vmatprep.subr.mxu0 0.0
  %326 = vmatpush1.msra.mxu0 0.0
  %327 = vmatprep.subr.mxu0 0.0
  %328 = vmatpush1.msra.mxu0 0.0
  %329 = vmatprep.subr.mxu0 0.0
  %330 = vmatpush1.msra.mxu0 0.0
  %331 = vmatprep.subr.mxu0 0.0
  %332 = vmatpush1.msra.mxu0 0.0
  %333 = vmatprep.subr.mxu0 0.0
  %334 = vmatpush1.msra.mxu0 0.0
  %335 = vmatprep.subr.mxu0 0.0
  %336 = vmatpush1.msra.mxu0 0.0
  %337 = vmatprep.subr.mxu0 0.0
  %338 = vmatpush1.msra.mxu0 0.0
  %339 = vmatprep.subr.mxu0 0.0
  %340 = vmatpush1.msra.mxu0 0.0
  %341 = vmatprep.subr.mxu0 0.0
  %342 = vmatpush1.msra.mxu0 0.0
  %343 = vmatprep.subr.mxu0 0.0
  %344 = vmatpush1.msra.mxu0 0.0
  %345 = vmatprep.subr.mxu0 0.0
  %346 = vmatpush1.msra.mxu0 0.0
  %347 = vmatprep.subr.mxu0 0.0
  %348 = vmatpush1.msra.mxu0 0.0
  %349 = vmatprep.subr.mxu0 0.0
  %350 = vmatpush1.msra.mxu0 0.0
  %351 = vmatprep.subr.mxu0 0.0
  %352 = vmatpush1.msra.mxu0 0.0
  %353 = vmatprep.subr.mxu0 0.0
  %354 = vmatpush1.msra.mxu0 0.0
  %355 = vmatprep.subr.mxu0 0.0
  %356 = vmatpush1.msra.mxu0 0.0
  %357 = vmatprep.subr.mxu0 0.0
  %358 = vmatpush1.msra.mxu0 0.0
  %359 = vmatprep.subr.mxu0 0.0
  %360 = vmatpush1.msra.mxu0 0.0
  %361 = vmatprep.subr.mxu0 0.0
  %362 = vmatpush1.msra.mxu0 0.0
  %363 = vmatprep.subr.mxu0 0.0
  %364 = vmatpush1.msra.mxu0 0.0
  %365 = vmatprep.subr.mxu0 0.0
  %366 = vmatpush1.msra.mxu0 0.0
  %367 = vmatprep.subr.mxu0 0.0
  %368 = vmatpush1.msra.mxu0 0.0
  %369 = vmatprep.subr.mxu0 0.0
  %370 = vmatpush1.msra.mxu0 0.0
  %371 = vmatprep.subr.mxu0 0.0
  %372 = vmatpush1.msra.mxu0 0.0
  %373 = vmatprep.subr.mxu0 0.0
  %374 = vmatpush1.msra.mxu0 0.0
  %375 = vmatprep.subr.mxu0 0.0
  %376 = vmatpush1.msra.mxu0 0.0
  %377 = vmatprep.subr.mxu0 0.0
  %378 = vmatpush1.msra.mxu0 0.0
  %379 = vmatprep.subr.mxu0 0.0
  %380 = vmatpush1.msra.mxu0 0.0
  %381 = vmatprep.subr.mxu0 0.0
  %382 = vmatpush1.msra.mxu0 0.0
  %383 = vmatprep.subr.mxu0 0.0
  %384 = vmatpush1.msra.mxu0 0.0
  %385 = vmatprep.mubr.f32.mxu0 0.0
  %v386 = vand.u32 %v28, 4294901760
  %v387 = vsub.f32 %v28, %v386
  %388 = vmatmul.mubr.f32.gmra.mrb[0].mxu0 %v387
  %v389 = vpop.f32.mrb[0].mxu0
  %v390 = vadd.f32 %v274, %v389
  %v391 = vpop.f32.mrb[0].mxu0
  %392 = vmatprep.mubr.f32.mxu0 0.0
  %v393 = vand.u32 %v31, 4294901760
  %v394 = vsub.f32 %v31, %v393
  %395 = vmatmul.mubr.f32.gmra.mrb[0].mxu0 %v394
  %v396 = vpop.f32.mrb[0].mxu0
  %v397 = vadd.f32 %v280, %v396
  %v398 = vpop.f32.mrb[0].mxu0
  %399 = vmatprep.mubr.f32.mxu0 0.0
  %v400 = vand.u32 %v34, 4294901760
  %v401 = vsub.f32 %v34, %v400
  %402 = vmatmul.mubr.f32.gmra.mrb[0].mxu0 %v401
  %v403 = vpop.f32.mrb[0].mxu0
  %v404 = vadd.f32 %v286, %v403
  %v405 = vpop.f32.mrb[0].mxu0
  %406 = vmatprep.mubr.f32.mxu0 0.0
  %v407 = vand.u32 %v37, 4294901760
  %v408 = vsub.f32 %v37, %v407
  %409 = vmatmul.mubr.f32.gmra.mrb[0].mxu0 %v408
  %v410 = vpop.f32.mrb[0].mxu0
  %v411 = vadd.f32 %v292, %v410
  %v412 = vpop.f32.mrb[0].mxu0
  %413 = vmatprep.mubr.f32.mxu0 0.0
  %v414 = vand.u32 %v40, 4294901760
  %v415 = vsub.f32 %v40, %v414
  %416 = vmatmul.mubr.f32.gmra.mrb[0].mxu0 %v415
  %v417 = vpop.f32.mrb[0].mxu0
  %v418 = vadd.f32 %v298, %v417
  %v419 = vpop.f32.mrb[0].mxu0
  %420 = vmatprep.mubr.f32.mxu0 0.0
  %v421 = vand.u32 %v43, 4294901760
  %v422 = vsub.f32 %v43, %v421
  %423 = vmatmul.mubr.f32.gmra.mrb[0].mxu0 %v422
  %v424 = vpop.f32.mrb[0].mxu0
  %v425 = vadd.f32 %v304, %v424
  %v426 = vpop.f32.mrb[0].mxu0
  %427 = vmatprep.mubr.f32.mxu0 0.0
  %v428 = vand.u32 %v46, 4294901760
  %v429 = vsub.f32 %v46, %v428
  %430 = vmatmul.mubr.f32.gmra.mrb[0].mxu0 %v429
  %v431 = vpop.f32.mrb[0].mxu0
  %v432 = vadd.f32 %v310, %v431
  %v433 = vpop.f32.mrb[0].mxu0
  %434 = vmatprep.mubr.f32.mxu0 0.0
  %v435 = vand.u32 %v49, 4294901760
  %v436 = vsub.f32 %v49, %v435
  %437 = vmatmul.mubr.f32.gmra.mrb[0].mxu0 %v436
  %v438 = vpop.f32.mrb[0].mxu0
  %v439 = vadd.f32 %v316, %v438
  %v440 = vpop.f32.mrb[0].mxu0
  %441 = vdwg.mxu0
  %442 = vmatprep.subr.mxu0 0.0
  %v443 = vand.u32 %v53, 4294901760
  %444 = vmatpush1.msra.mxu0 %v443
  %445 = vmatprep.subr.mxu0 0.0
  %446 = vmatpush1.msra.mxu0 0.0
  %447 = vmatprep.subr.mxu0 0.0
  %448 = vmatpush1.msra.mxu0 0.0
  %449 = vmatprep.subr.mxu0 0.0
  %450 = vmatpush1.msra.mxu0 0.0
  %451 = vmatprep.subr.mxu0 0.0
  %452 = vmatpush1.msra.mxu0 0.0
  %453 = vmatprep.subr.mxu0 0.0
  %454 = vmatpush1.msra.mxu0 0.0
  %455 = vmatprep.subr.mxu0 0.0
  %456 = vmatpush1.msra.mxu0 0.0
  %457 = vmatprep.subr.mxu0 0.0
  %458 = vmatpush1.msra.mxu0 0.0
  %459 = vmatprep.subr.mxu0 0.0
  %460 = vmatpush1.msra.mxu0 0.0
  %461 = vmatprep.subr.mxu0 0.0
  %462 = vmatpush1.msra.mxu0 0.0
  %463 = vmatprep.subr.mxu0 0.0
  %464 = vmatpush1.msra.mxu0 0.0
  %465 = vmatprep.subr.mxu0 0.0
  %466 = vmatpush1.msra.mxu0 0.0
  %467 = vmatprep.subr.mxu0 0.0
  %468 = vmatpush1.msra.mxu0 0.0
  %469 = vmatprep.subr.mxu0 0.0
  %470 = vmatpush1.msra.mxu0 0.0
  %471 = vmatprep.subr.mxu0 0.0
  %472 = vmatpush1.msra.mxu0 0.0
  %473 = vmatprep.subr.mxu0 0.0
  %474 = vmatpush1.msra.mxu0 0.0
  %475 = vmatprep.subr.mxu0 0.0
  %476 = vmatpush1.msra.mxu0 0.0
  %477 = vmatprep.subr.mxu0 0.0
  %478 = vmatpush1.msra.mxu0 0.0
  %479 = vmatprep.subr.mxu0 0.0
  %480 = vmatpush1.msra.mxu0 0.0
  %481 = vmatprep.subr.mxu0 0.0
  %482 = vmatpush1.msra.mxu0 0.0
  %483 = vmatprep.subr.mxu0 0.0
  %484 = vmatpush1.msra.mxu0 0.0
  %485 = vmatprep.subr.mxu0 0.0
  %486 = vmatpush1.msra.mxu0 0.0
  %487 = vmatprep.subr.mxu0 0.0
  %488 = vmatpush1.msra.mxu0 0.0
  %489 = vmatprep.subr.mxu0 0.0
  %490 = vmatpush1.msra.mxu0 0.0
  %491 = vmatprep.subr.mxu0 0.0
  %492 = vmatpush1.msra.mxu0 0.0
  %493 = vmatprep.subr.mxu0 0.0
  %494 = vmatpush1.msra.mxu0 0.0
  %495 = vmatprep.subr.mxu0 0.0
  %496 = vmatpush1.msra.mxu0 0.0
  %497 = vmatprep.subr.mxu0 0.0
  %498 = vmatpush1.msra.mxu0 0.0
  %499 = vmatprep.subr.mxu0 0.0
  %500 = vmatpush1.msra.mxu0 0.0
  %501 = vmatprep.subr.mxu0 0.0
  %502 = vmatpush1.msra.mxu0 0.0
  %503 = vmatprep.subr.mxu0 0.0
  %504 = vmatpush1.msra.mxu0 0.0
  %505 = vmatprep.subr.mxu0 0.0
  %506 = vmatpush1.msra.mxu0 0.0
  %507 = vmatprep.mubr.f32.mxu0 0.0
  %v508 = vand.u32 %v28, 4294901760
  %v509 = vsub.f32 %v28, %v508
  %v510 = vand.u32 %v509, 4294901760
  %511 = vmatmul.mubr.f32.gmra.mrb[0].mxu0 %v510
  %v512 = vpop.f32.mrb[0].mxu0
  %v513 = vadd.f32 %v390, %v512
  %v514 = vpop.f32.mrb[0].mxu0
  %515 = vmatprep.mubr.f32.mxu0 0.0
  %v516 = vand.u32 %v31, 4294901760
  %v517 = vsub.f32 %v31, %v516
  %v518 = vand.u32 %v517, 4294901760
  %519 = vmatmul.mubr.f32.gmra.mrb[0].mxu0 %v518
  %v520 = vpop.f32.mrb[0].mxu0
  %v521 = vadd.f32 %v397, %v520
  %v522 = vpop.f32.mrb[0].mxu0
  %523 = vmatprep.mubr.f32.mxu0 0.0
  %v524 = vand.u32 %v34, 4294901760
  %v525 = vsub.f32 %v34, %v524
  %v526 = vand.u32 %v525, 4294901760
  %527 = vmatmul.mubr.f32.gmra.mrb[0].mxu0 %v526
  %v528 = vpop.f32.mrb[0].mxu0
  %v529 = vadd.f32 %v404, %v528
  %v530 = vpop.f32.mrb[0].mxu0
  %531 = vmatprep.mubr.f32.mxu0 0.0
  %v532 = vand.u32 %v37, 4294901760
  %v533 = vsub.f32 %v37, %v532
  %v534 = vand.u32 %v533, 4294901760
  %535 = vmatmul.mubr.f32.gmra.mrb[0].mxu0 %v534
  %v536 = vpop.f32.mrb[0].mxu0
  %v537 = vadd.f32 %v411, %v536
  %v538 = vpop.f32.mrb[0].mxu0
  %539 = vmatprep.mubr.f32.mxu0 0.0
  %v540 = vand.u32 %v40, 4294901760
  %v541 = vsub.f32 %v40, %v540
  %v542 = vand.u32 %v541, 4294901760
  %543 = vmatmul.mubr.f32.gmra.mrb[0].mxu0 %v542
  %v544 = vpop.f32.mrb[0].mxu0
  %v545 = vadd.f32 %v418, %v544
  %v546 = vpop.f32.mrb[0].mxu0
  %547 = vmatprep.mubr.f32.mxu0 0.0
  %v548 = vand.u32 %v43, 4294901760
  %v549 = vsub.f32 %v43, %v548
  %v550 = vand.u32 %v549, 4294901760
  %551 = vmatmul.mubr.f32.gmra.mrb[0].mxu0 %v550
  %v552 = vpop.f32.mrb[0].mxu0
  %v553 = vadd.f32 %v425, %v552
  %v554 = vpop.f32.mrb[0].mxu0
  %555 = vmatprep.mubr.f32.mxu0 0.0
  %v556 = vand.u32 %v46, 4294901760
  %v557 = vsub.f32 %v46, %v556
  %v558 = vand.u32 %v557, 4294901760
  %559 = vmatmul.mubr.f32.gmra.mrb[0].mxu0 %v558
  %v560 = vpop.f32.mrb[0].mxu0
  %v561 = vadd.f32 %v432, %v560
  %v562 = vpop.f32.mrb[0].mxu0
  %563 = vmatprep.mubr.f32.mxu0 0.0
  %v564 = vand.u32 %v49, 4294901760
  %v565 = vsub.f32 %v49, %v564
  %v566 = vand.u32 %v565, 4294901760
  %567 = vmatmul.mubr.f32.gmra.mrb[0].mxu0 %v566
  %v568 = vpop.f32.mrb[0].mxu0
  %v569 = vadd.f32 %v439, %v568
  %v570 = vpop.f32.mrb[0].mxu0
  %571 = vdwg.mxu0
  %572 = vmatprep.subr.mxu0 0.0
  %v573 = vand.u32 %v53, 4294901760
  %v574 = vsub.f32 %v53, %v573
  %v575 = vand.u32 %v574, 4294901760
  %576 = vmatpush1.msra.mxu0 %v575
  %577 = vmatprep.subr.mxu0 0.0
  %578 = vmatpush1.msra.mxu0 0.0
  %579 = vmatprep.subr.mxu0 0.0
  %580 = vmatpush1.msra.mxu0 0.0
  %581 = vmatprep.subr.mxu0 0.0
  %582 = vmatpush1.msra.mxu0 0.0
  %583 = vmatprep.subr.mxu0 0.0
  %584 = vmatpush1.msra.mxu0 0.0
  %585 = vmatprep.subr.mxu0 0.0
  %586 = vmatpush1.msra.mxu0 0.0
  %587 = vmatprep.subr.mxu0 0.0
  %588 = vmatpush1.msra.mxu0 0.0
  %589 = vmatprep.subr.mxu0 0.0
  %590 = vmatpush1.msra.mxu0 0.0
  %591 = vmatprep.subr.mxu0 0.0
  %592 = vmatpush1.msra.mxu0 0.0
  %593 = vmatprep.subr.mxu0 0.0
  %594 = vmatpush1.msra.mxu0 0.0
  %595 = vmatprep.subr.mxu0 0.0
  %596 = vmatpush1.msra.mxu0 0.0
  %597 = vmatprep.subr.mxu0 0.0
  %598 = vmatpush1.msra.mxu0 0.0
  %599 = vmatprep.subr.mxu0 0.0
  %600 = vmatpush1.msra.mxu0 0.0
  %601 = vmatprep.subr.mxu0 0.0
  %602 = vmatpush1.msra.mxu0 0.0
  %603 = vmatprep.subr.mxu0 0.0
  %604 = vmatpush1.msra.mxu0 0.0
  %605 = vmatprep.subr.mxu0 0.0
  %606 = vmatpush1.msra.mxu0 0.0
  %607 = vmatprep.subr.mxu0 0.0
  %608 = vmatpush1.msra.mxu0 0.0
  %609 = vmatprep.subr.mxu0 0.0
  %610 = vmatpush1.msra.mxu0 0.0
  %611 = vmatprep.subr.mxu0 0.0
  %612 = vmatpush1.msra.mxu0 0.0
  %613 = vmatprep.subr.mxu0 0.0
  %614 = vmatpush1.msra.mxu0 0.0
  %615 = vmatprep.subr.mxu0 0.0
  %616 = vmatpush1.msra.mxu0 0.0
  %617 = vmatprep.subr.mxu0 0.0
  %618 = vmatpush1.msra.mxu0 0.0
  %619 = vmatprep.subr.mxu0 0.0
  %620 = vmatpush1.msra.mxu0 0.0
  %621 = vmatprep.subr.mxu0 0.0
  %622 = vmatpush1.msra.mxu0 0.0
  %623 = vmatprep.subr.mxu0 0.0
  %624 = vmatpush1.msra.mxu0 0.0
  %625 = vmatprep.subr.mxu0 0.0
  %626 = vmatpush1.msra.mxu0 0.0
  %627 = vmatprep.subr.mxu0 0.0
  %628 = vmatpush1.msra.mxu0 0.0
  %629 = vmatprep.subr.mxu0 0.0
  %630 = vmatpush1.msra.mxu0 0.0
  %631 = vmatprep.subr.mxu0 0.0
  %632 = vmatpush1.msra.mxu0 0.0
  %633 = vmatprep.subr.mxu0 0.0
  %634 = vmatpush1.msra.mxu0 0.0
  %635 = vmatprep.subr.mxu0 0.0
  %636 = vmatpush1.msra.mxu0 0.0
  %637 = vmatprep.subr.mxu0 0.0
  %638 = vmatpush1.msra.mxu0 0.0
  %639 = vmatprep.mubr.f32.mxu0 0.0
  %v640 = vand.u32 %v28, 4294901760
  %641 = vmatmul.mubr.f32.gmra.mrb[0].mxu0 %v640
  %v642 = vpop.f32.mrb[0].mxu0
  %v643 = vadd.f32 %v513, %v642
  %v644 = vpop.f32.mrb[0].mxu0
  %645 = vmatprep.mubr.f32.mxu0 0.0
  %v646 = vand.u32 %v31, 4294901760
  %647 = vmatmul.mubr.f32.gmra.mrb[0].mxu0 %v646
  %v648 = vpop.f32.mrb[0].mxu0
  %v649 = vadd.f32 %v521, %v648
  %v650 = vpop.f32.mrb[0].mxu0
  %651 = vmatprep.mubr.f32.mxu0 0.0
  %v652 = vand.u32 %v34, 4294901760
  %653 = vmatmul.mubr.f32.gmra.mrb[0].mxu0 %v652
  %v654 = vpop.f32.mrb[0].mxu0
  %v655 = vadd.f32 %v529, %v654
  %v656 = vpop.f32.mrb[0].mxu0
  %657 = vmatprep.mubr.f32.mxu0 0.0
  %v658 = vand.u32 %v37, 4294901760
  %659 = vmatmul.mubr.f32.gmra.mrb[0].mxu0 %v658
  %v660 = vpop.f32.mrb[0].mxu0
  %v661 = vadd.f32 %v537, %v660
  %v662 = vpop.f32.mrb[0].mxu0
  %663 = vmatprep.mubr.f32.mxu0 0.0
  %v664 = vand.u32 %v40, 4294901760
  %665 = vmatmul.mubr.f32.gmra.mrb[0].mxu0 %v664
  %v666 = vpop.f32.mrb[0].mxu0
  %v667 = vadd.f32 %v545, %v666
  %v668 = vpop.f32.mrb[0].mxu0
  %669 = vmatprep.mubr.f32.mxu0 0.0
  %v670 = vand.u32 %v43, 4294901760
  %671 = vmatmul.mubr.f32.gmra.mrb[0].mxu0 %v670
  %v672 = vpop.f32.mrb[0].mxu0
  %v673 = vadd.f32 %v553, %v672
  %v674 = vpop.f32.mrb[0].mxu0
  %675 = vmatprep.mubr.f32.mxu0 0.0
  %v676 = vand.u32 %v46, 4294901760
  %677 = vmatmul.mubr.f32.gmra.mrb[0].mxu0 %v676
  %v678 = vpop.f32.mrb[0].mxu0
  %v679 = vadd.f32 %v561, %v678
  %v680 = vpop.f32.mrb[0].mxu0
  %681 = vmatprep.mubr.f32.mxu0 0.0
  %v682 = vand.u32 %v49, 4294901760
  %683 = vmatmul.mubr.f32.gmra.mrb[0].mxu0 %v682
  %v684 = vpop.f32.mrb[0].mxu0
  %v685 = vadd.f32 %v569, %v684
  %v686 = vpop.f32.mrb[0].mxu0
  %687 = vdwg.mxu0
  %688 = vmatprep.subr.mxu0 0.0
  %v689 = vand.u32 %v53, 4294901760
  %690 = vmatpush1.msra.mxu0 %v689
  %691 = vmatprep.subr.mxu0 0.0
  %692 = vmatpush1.msra.mxu0 0.0
  %693 = vmatprep.subr.mxu0 0.0
  %694 = vmatpush1.msra.mxu0 0.0
  %695 = vmatprep.subr.mxu0 0.0
  %696 = vmatpush1.msra.mxu0 0.0
  %697 = vmatprep.subr.mxu0 0.0
  %698 = vmatpush1.msra.mxu0 0.0
  %699 = vmatprep.subr.mxu0 0.0
  %700 = vmatpush1.msra.mxu0 0.0
  %701 = vmatprep.subr.mxu0 0.0
  %702 = vmatpush1.msra.mxu0 0.0
  %703 = vmatprep.subr.mxu0 0.0
  %704 = vmatpush1.msra.mxu0 0.0
  %705 = vmatprep.subr.mxu0 0.0
  %706 = vmatpush1.msra.mxu0 0.0
  %707 = vmatprep.subr.mxu0 0.0
  %708 = vmatpush1.msra.mxu0 0.0
  %709 = vmatprep.subr.mxu0 0.0
  %710 = vmatpush1.msra.mxu0 0.0
  %711 = vmatprep.subr.mxu0 0.0
  %712 = vmatpush1.msra.mxu0 0.0
  %713 = vmatprep.subr.mxu0 0.0
  %714 = vmatpush1.msra.mxu0 0.0
  %715 = vmatprep.subr.mxu0 0.0
  %716 = vmatpush1.msra.mxu0 0.0
  %717 = vmatprep.subr.mxu0 0.0
  %718 = vmatpush1.msra.mxu0 0.0
  %719 = vmatprep.subr.mxu0 0.0
  %720 = vmatpush1.msra.mxu0 0.0
  %721 = vmatprep.subr.mxu0 0.0
  %722 = vmatpush1.msra.mxu0 0.0
  %723 = vmatprep.subr.mxu0 0.0
  %724 = vmatpush1.msra.mxu0 0.0
  %725 = vmatprep.subr.mxu0 0.0
  %726 = vmatpush1.msra.mxu0 0.0
  %727 = vmatprep.subr.mxu0 0.0
  %728 = vmatpush1.msra.mxu0 0.0
  %729 = vmatprep.subr.mxu0 0.0
  %730 = vmatpush1.msra.mxu0 0.0
  %731 = vmatprep.subr.mxu0 0.0
  %732 = vmatpush1.msra.mxu0 0.0
  %733 = vmatprep.subr.mxu0 0.0
  %734 = vmatpush1.msra.mxu0 0.0
  %735 = vmatprep.subr.mxu0 0.0
  %736 = vmatpush1.msra.mxu0 0.0
  %737 = vmatprep.subr.mxu0 0.0
  %738 = vmatpush1.msra.mxu0 0.0
  %739 = vmatprep.subr.mxu0 0.0
  %740 = vmatpush1.msra.mxu0 0.0
  %741 = vmatprep.subr.mxu0 0.0
  %742 = vmatpush1.msra.mxu0 0.0
  %743 = vmatprep.subr.mxu0 0.0
  %744 = vmatpush1.msra.mxu0 0.0
  %745 = vmatprep.subr.mxu0 0.0
  %746 = vmatpush1.msra.mxu0 0.0
  %747 = vmatprep.subr.mxu0 0.0
  %748 = vmatpush1.msra.mxu0 0.0
  %749 = vmatprep.subr.mxu0 0.0
  %750 = vmatpush1.msra.mxu0 0.0
  %751 = vmatprep.subr.mxu0 0.0
  %752 = vmatpush1.msra.mxu0 0.0
  %753 = vmatprep.mubr.f32.mxu0 0.0
  %v754 = vand.u32 %v28, 4294901760
  %755 = vmatmul.mubr.f32.gmra.mrb[0].mxu0 %v754
  %v756 = vpop.f32.mrb[0].mxu0
  %v757 = vadd.f32 %v643, %v756
  %v758 = vpop.f32.mrb[0].mxu0
  %759 = vmatprep.mubr.f32.mxu0 0.0
  %v760 = vand.u32 %v31, 4294901760
  %761 = vmatmul.mubr.f32.gmra.mrb[0].mxu0 %v760
  %v762 = vpop.f32.mrb[0].mxu0
  %v763 = vadd.f32 %v649, %v762
  %v764 = vpop.f32.mrb[0].mxu0
  %765 = vmatprep.mubr.f32.mxu0 0.0
  %v766 = vand.u32 %v34, 4294901760
  %767 = vmatmul.mubr.f32.gmra.mrb[0].mxu0 %v766
  %v768 = vpop.f32.mrb[0].mxu0
  %v769 = vadd.f32 %v655, %v768
  %v770 = vpop.f32.mrb[0].mxu0
  %771 = vmatprep.mubr.f32.mxu0 0.0
  %v772 = vand.u32 %v37, 4294901760
  %773 = vmatmul.mubr.f32.gmra.mrb[0].mxu0 %v772
  %v774 = vpop.f32.mrb[0].mxu0
  %v775 = vadd.f32 %v661, %v774
  %v776 = vpop.f32.mrb[0].mxu0
  %777 = vmatprep.mubr.f32.mxu0 0.0
  %v778 = vand.u32 %v40, 4294901760
  %779 = vmatmul.mubr.f32.gmra.mrb[0].mxu0 %v778
  %v780 = vpop.f32.mrb[0].mxu0
  %v781 = vadd.f32 %v667, %v780
  %v782 = vpop.f32.mrb[0].mxu0
  %783 = vmatprep.mubr.f32.mxu0 0.0
  %v784 = vand.u32 %v43, 4294901760
  %785 = vmatmul.mubr.f32.gmra.mrb[0].mxu0 %v784
  %v786 = vpop.f32.mrb[0].mxu0
  %v787 = vadd.f32 %v673, %v786
  %v788 = vpop.f32.mrb[0].mxu0
  %789 = vmatprep.mubr.f32.mxu0 0.0
  %v790 = vand.u32 %v46, 4294901760
  %791 = vmatmul.mubr.f32.gmra.mrb[0].mxu0 %v790
  %v792 = vpop.f32.mrb[0].mxu0
  %v793 = vadd.f32 %v679, %v792
  %v794 = vpop.f32.mrb[0].mxu0
  %795 = vmatprep.mubr.f32.mxu0 0.0
  %v796 = vand.u32 %v49, 4294901760
  %797 = vmatmul.mubr.f32.gmra.mrb[0].mxu0 %v796
  %v798 = vpop.f32.mrb[0].mxu0
  %v799 = vadd.f32 %v685, %v798
  %v800 = vpop.f32.mrb[0].mxu0
  %801 = vdwg.mxu0
  %v802 = vld [vmem:[%s2] sm:$0x1]
  %v804 = vlaneseq
  %v805 = vshrl.u32 %v804, 7
  %v806 = vsub.s32 0, %v805
  %v807 = vrot.slane %v802, %v806
  %v809 = vmul.f32 %v757, %v807
  %v810 = vmul.f32 %v763, %v807
  %v811 = vmul.f32 %v769, %v807
  %v812 = vmul.f32 %v775, %v807
  %v813 = vmul.f32 %v781, %v807
  %v814 = vmul.f32 %v787, %v807
  %v815 = vmul.f32 %v793, %v807
  %v816 = vmul.f32 %v799, %v807
  %v817 = vld [vmem:[%s3] sm:$0x1]
  %v819 = vlaneseq
  %v820 = vshrl.u32 %v819, 7
  %v821 = vsub.s32 0, %v820
  %v822 = vrot.slane %v817, %v821
  %v824 = vadd.f32 %v809, %v822
  %v825 = vadd.f32 %v810, %v822
  %v826 = vadd.f32 %v811, %v822
  %v827 = vadd.f32 %v812, %v822
  %v828 = vadd.f32 %v813, %v822
  %v829 = vadd.f32 %v814, %v822
  %v830 = vadd.f32 %v815, %v822
  %v831 = vadd.f32 %v816, %v822
  %v832 = vand.u32 2147483647, %v824
  %vm833 = vcmp.le.f32.partialorder %v832, 0.7853982
  %vm834 = vcmp.lt.s32.totalorder %v824, 0
  %v835 = vand.u32 %v824, 2139095040
  %v836 = vshrl.u32 %v835, 23
  %v837 = vsub.s32 %v836, 127
  %v838 = vand.u32 2147483647, %v824
  %v839 = vand.u32 %v838, 8388607
  %v840 = vor.u32 %v839, 8388608
  %v841 = vsub.s32 0, %v840
  %v842 = vadd.s32 %v837, 1
  %vm843 = vcmp.gt.s32.totalorder %v842, 0
  %v844 = vsel %vm843, %v842, 0
  %v845 = vshrl.u32 %v844, 5
  %v846 = vand.u32 %v844, 31
  %v847 = vsub.s32 32, %v846
  %v848 = vshrl.u32 683565275, %v847
  %v849 = vshll.u32 683565275, %v846
  %v850 = vshrl.u32 2475754826, %v847
  %v851 = vor.u32 %v849, %v850
  %v852 = vshll.u32 2475754826, %v846
  %v853 = vshrl.u32 2131351028, %v847
  %v854 = vor.u32 %v852, %v853
  %v855 = vshll.u32 2131351028, %v846
  %v856 = vshrl.u32 2102212464, %v847
  %v857 = vor.u32 %v855, %v856
  %v858 = vshll.u32 2102212464, %v846
  %v859 = vshrl.u32 920167782, %v847
  %v860 = vor.u32 %v858, %v859
  %v861 = vshll.u32 920167782, %v846
  %v862 = vshrl.u32 1326507024, %v847
  %v863 = vor.u32 %v861, %v862
  %vm864 = vcmp.lt.s32.totalorder %v845, 1
  %vm865 = vcmp.lt.s32.totalorder %v845, 2
  %vm866 = vcmp.lt.s32.totalorder %v845, 3
  %vm867 = vcmp.lt.s32.totalorder %v845, 4
  %v868 = vsel %vm864, %v848, %v851
  %v869 = vsel %vm867, %v857, 2102212464
  %v870 = vsel %vm866, %v854, %v869
  %v871 = vsel %vm865, %v868, %v870
  %v872 = vsel %vm864, %v851, %v854
  %v873 = vsel %vm867, %v860, 920167782
  %v874 = vsel %vm866, %v857, %v873
  %v875 = vsel %vm865, %v872, %v874
  %v876 = vsel %vm864, %v854, %v857
  %v877 = vsel %vm867, %v863, 1326507024
  %v878 = vsel %vm866, %v860, %v877
  %v879 = vsel %vm865, %v876, %v878
  %v880 = vshll.u32 %v840, 8
  %v881 = vmul.u32.u64.compose %v880, %v879
  %v882 = vextract.low.u32 %v881
  %v883 = vextract.high.u32 %v881
  %v884 = vmul.u32.u64.compose %v880, %v875
  %v885 = vextract.low.u32 %v884
  %v886 = vextract.high.u32 %v884
  %v887 = vmul.u32 %v880, %v871
  %v888 = vadd.s32 %v883, %v885
  %vm889 = vc.u32 %v883, %v885
  %v890 = vadd.s32 %v886, 1
  %v891 = vsel %vm889, %v890, %v886
  %v892 = vadd.s32 %v887, %v891
  %v893 = vadd.s32 %v892, 536870912
  %v894 = vshrl.u32 %v893, 30
  %v895 = vshll.u32 %v894, 30
  %v896 = vsub.s32 %v892, %v895
  %vm897 = vcmp.lt.s32.totalorder %v896, 0
  %v898 = vsub.s32 0, %v896
  %v899 = vsel %vm897, %v898, %v896
  %v900 = vclz %v899
  %v901 = vsub.s32 %v900, 2
  %vm902 = vcmp.gt.s32.totalorder 0, %v901
  %v903 = vsel %vm902, 0, %v901
  %v904 = vsub.s32 32, %v903
  %v905 = vshll.u32 %v896, %v903
  %v906 = vshrl.u32 %v888, %v904
  %v907 = vor.u32 %v905, %v906
  %v908 = vsub.s32 4294967266, %v903
  %v909 = vadd.s32 %v908, 127
  %v910 = vshll.u32 %v909, 23
  %v911 = vor.u32 4788187, %v910
  %v912 = vand.u32 2147483647, %v911
  %v914 = vcvt.s32.f32 %v907
  %v915 = vmul.f32 %v914, %v912
  %v916 = vxor.u32 %v915, 2147483648
  %v917 = vsel %vm834, %v916, %v915
  %v918 = vsub.s32 4, %v894
  %v919 = vsel %vm834, %v918, %v894
  %v920 = vsel %vm833, %v824, %v917
  %v921 = vsel %vm833, 0, %v919
  %v922 = vcosq.f32.pop %v920
  %v923 = vsinq.f32.pop %v920
  %vm924 = vweird.f32 %v824
  %v925 = vadd.s32 %v921, 3
  %v926 = vand.u32 %v925, 3
  %vm927 = vcmp.lt.s32.totalorder %v926, 2
  %vm928 = vcmp.eq.s32.totalorder %v926, 0
  %v929 = vxor.u32 %v923, 2147483648
  %v930 = vsel %vm928, %v922, %v929
  %vm931 = vcmp.eq.s32.totalorder %v926, 2
  %v932 = vxor.u32 %v922, 2147483648
  %v933 = vsel %vm931, %v932, %v923
  %v934 = vsel %vm927, %v930, %v933
  %v935 = vsel %vm924, nan, %v934
  %v936 = vand.u32 2147483647, %v825
  %vm937 = vcmp.le.f32.partialorder %v936, 0.7853982
  %vm938 = vcmp.lt.s32.totalorder %v825, 0
  %v939 = vand.u32 %v825, 2139095040
  %v940 = vshrl.u32 %v939, 23
  %v941 = vsub.s32 %v940, 127
  %v942 = vand.u32 2147483647, %v825
  %v943 = vand.u32 %v942, 8388607
  %v944 = vor.u32 %v943, 8388608
  %v945 = vsub.s32 0, %v944
  %v946 = vadd.s32 %v941, 1
  %vm947 = vcmp.gt.s32.totalorder %v946, 0
  %v948 = vsel %vm947, %v946, 0
  %v949 = vshrl.u32 %v948, 5
  %v950 = vand.u32 %v948, 31
  %v951 = vsub.s32 32, %v950
  %v952 = vshrl.u32 683565275, %v951
  %v953 = vshll.u32 683565275, %v950
  %v954 = vshrl.u32 2475754826, %v951
  %v955 = vor.u32 %v953, %v954
  %v956 = vshll.u32 2475754826, %v950
  %v957 = vshrl.u32 2131351028, %v951
  %v958 = vor.u32 %v956, %v957
  %v959 = vshll.u32 2131351028, %v950
  %v960 = vshrl.u32 2102212464, %v951
  %v961 = vor.u32 %v959, %v960
  %v962 = vshll.u32 2102212464, %v950
  %v963 = vshrl.u32 920167782, %v951
  %v964 = vor.u32 %v962, %v963
  %v965 = vshll.u32 920167782, %v950
  %v966 = vshrl.u32 1326507024, %v951
  %v967 = vor.u32 %v965, %v966
  %vm968 = vcmp.lt.s32.totalorder %v949, 1
  %vm969 = vcmp.lt.s32.totalorder %v949, 2
  %vm970 = vcmp.lt.s32.totalorder %v949, 3
  %vm971 = vcmp.lt.s32.totalorder %v949, 4
  %v972 = vsel %vm968, %v952, %v955
  %v973 = vsel %vm971, %v961, 2102212464
  %v974 = vsel %vm970, %v958, %v973
  %v975 = vsel %vm969, %v972, %v974
  %v976 = vsel %vm968, %v955, %v958
  %v977 = vsel %vm971, %v964, 920167782
  %v978 = vsel %vm970, %v961, %v977
  %v979 = vsel %vm969, %v976, %v978
  %v980 = vsel %vm968, %v958, %v961
  %v981 = vsel %vm971, %v967, 1326507024
  %v982 = vsel %vm970, %v964, %v981
  %v983 = vsel %vm969, %v980, %v982
  %v984 = vshll.u32 %v944, 8
  %v985 = vmul.u32.u64.compose %v984, %v983
  %v986 = vextract.low.u32 %v985
  %v987 = vextract.high.u32 %v985
  %v988 = vmul.u32.u64.compose %v984, %v979
  %v989 = vextract.low.u32 %v988
  %v990 = vextract.high.u32 %v988
  %v991 = vmul.u32 %v984, %v975
  %v992 = vadd.s32 %v987, %v989
  %vm993 = vc.u32 %v987, %v989
  %v994 = vadd.s32 %v990, 1
  %v995 = vsel %vm993, %v994, %v990
  %v996 = vadd.s32 %v991, %v995
  %v997 = vadd.s32 %v996, 536870912
  %v998 = vshrl.u32 %v997, 30
  %v999 = vshll.u32 %v998, 30
  %v1000 = vsub.s32 %v996, %v999
  %vm1001 = vcmp.lt.s32.totalorder %v1000, 0
  %v1002 = vsub.s32 0, %v1000
  %v1003 = vsel %vm1001, %v1002, %v1000
  %v1004 = vclz %v1003
  %v1005 = vsub.s32 %v1004, 2
  %vm1006 = vcmp.gt.s32.totalorder 0, %v1005
  %v1007 = vsel %vm1006, 0, %v1005
  %v1008 = vsub.s32 32, %v1007
  %v1009 = vshll.u32 %v1000, %v1007
  %v1010 = vshrl.u32 %v992, %v1008
  %v1011 = vor.u32 %v1009, %v1010
  %v1012 = vsub.s32 4294967266, %v1007
  %v1013 = vadd.s32 %v1012, 127
  %v1014 = vshll.u32 %v1013, 23
  %v1015 = vor.u32 4788187, %v1014
  %v1016 = vand.u32 2147483647, %v1015
  %v1018 = vcvt.s32.f32 %v1011
  %v1019 = vmul.f32 %v1018, %v1016
  %v1020 = vxor.u32 %v1019, 2147483648
  %v1021 = vsel %vm938, %v1020, %v1019
  %v1022 = vsub.s32 4, %v998
  %v1023 = vsel %vm938, %v1022, %v998
  %v1024 = vsel %vm937, %v825, %v1021
  %v1025 = vsel %vm937, 0, %v1023
  %v1026 = vcosq.f32.pop %v1024
  %v1027 = vsinq.f32.pop %v1024
  %vm1028 = vweird.f32 %v825
  %v1029 = vadd.s32 %v1025, 3
  %v1030 = vand.u32 %v1029, 3
  %vm1031 = vcmp.lt.s32.totalorder %v1030, 2
  %vm1032 = vcmp.eq.s32.totalorder %v1030, 0
  %v1033 = vxor.u32 %v1027, 2147483648
  %v1034 = vsel %vm1032, %v1026, %v1033
  %vm1035 = vcmp.eq.s32.totalorder %v1030, 2
  %v1036 = vxor.u32 %v1026, 2147483648
  %v1037 = vsel %vm1035, %v1036, %v1027
  %v1038 = vsel %vm1031, %v1034, %v1037
  %v1039 = vsel %vm1028, nan, %v1038
  %v1040 = vand.u32 2147483647, %v826
  %vm1041 = vcmp.le.f32.partialorder %v1040, 0.7853982
  %vm1042 = vcmp.lt.s32.totalorder %v826, 0
  %v1043 = vand.u32 %v826, 2139095040
  %v1044 = vshrl.u32 %v1043, 23
  %v1045 = vsub.s32 %v1044, 127
  %v1046 = vand.u32 2147483647, %v826
  %v1047 = vand.u32 %v1046, 8388607
  %v1048 = vor.u32 %v1047, 8388608
  %v1049 = vsub.s32 0, %v1048
  %v1050 = vadd.s32 %v1045, 1
  %vm1051 = vcmp.gt.s32.totalorder %v1050, 0
  %v1052 = vsel %vm1051, %v1050, 0
  %v1053 = vshrl.u32 %v1052, 5
  %v1054 = vand.u32 %v1052, 31
  %v1055 = vsub.s32 32, %v1054
  %v1056 = vshrl.u32 683565275, %v1055
  %v1057 = vshll.u32 683565275, %v1054
  %v1058 = vshrl.u32 2475754826, %v1055
  %v1059 = vor.u32 %v1057, %v1058
  %v1060 = vshll.u32 2475754826, %v1054
  %v1061 = vshrl.u32 2131351028, %v1055
  %v1062 = vor.u32 %v1060, %v1061
  %v1063 = vshll.u32 2131351028, %v1054
  %v1064 = vshrl.u32 2102212464, %v1055
  %v1065 = vor.u32 %v1063, %v1064
  %v1066 = vshll.u32 2102212464, %v1054
  %v1067 = vshrl.u32 920167782, %v1055
  %v1068 = vor.u32 %v1066, %v1067
  %v1069 = vshll.u32 920167782, %v1054
  %v1070 = vshrl.u32 1326507024, %v1055
  %v1071 = vor.u32 %v1069, %v1070
  %vm1072 = vcmp.lt.s32.totalorder %v1053, 1
  %vm1073 = vcmp.lt.s32.totalorder %v1053, 2
  %vm1074 = vcmp.lt.s32.totalorder %v1053, 3
  %vm1075 = vcmp.lt.s32.totalorder %v1053, 4
  %v1076 = vsel %vm1072, %v1056, %v1059
  %v1077 = vsel %vm1075, %v1065, 2102212464
  %v1078 = vsel %vm1074, %v1062, %v1077
  %v1079 = vsel %vm1073, %v1076, %v1078
  %v1080 = vsel %vm1072, %v1059, %v1062
  %v1081 = vsel %vm1075, %v1068, 920167782
  %v1082 = vsel %vm1074, %v1065, %v1081
  %v1083 = vsel %vm1073, %v1080, %v1082
  %v1084 = vsel %vm1072, %v1062, %v1065
  %v1085 = vsel %vm1075, %v1071, 1326507024
  %v1086 = vsel %vm1074, %v1068, %v1085
  %v1087 = vsel %vm1073, %v1084, %v1086
  %v1088 = vshll.u32 %v1048, 8
  %v1089 = vmul.u32.u64.compose %v1088, %v1087
  %v1090 = vextract.low.u32 %v1089
  %v1091 = vextract.high.u32 %v1089
  %v1092 = vmul.u32.u64.compose %v1088, %v1083
  %v1093 = vextract.low.u32 %v1092
  %v1094 = vextract.high.u32 %v1092
  %v1095 = vmul.u32 %v1088, %v1079
  %v1096 = vadd.s32 %v1091, %v1093
  %vm1097 = vc.u32 %v1091, %v1093
  %v1098 = vadd.s32 %v1094, 1
  %v1099 = vsel %vm1097, %v1098, %v1094
  %v1100 = vadd.s32 %v1095, %v1099
  %v1101 = vadd.s32 %v1100, 536870912
  %v1102 = vshrl.u32 %v1101, 30
  %v1103 = vshll.u32 %v1102, 30
  %v1104 = vsub.s32 %v1100, %v1103
  %vm1105 = vcmp.lt.s32.totalorder %v1104, 0
  %v1106 = vsub.s32 0, %v1104
  %v1107 = vsel %vm1105, %v1106, %v1104
  %v1108 = vclz %v1107
  %v1109 = vsub.s32 %v1108, 2
  %vm1110 = vcmp.gt.s32.totalorder 0, %v1109
  %v1111 = vsel %vm1110, 0, %v1109
  %v1112 = vsub.s32 32, %v1111
  %v1113 = vshll.u32 %v1104, %v1111
  %v1114 = vshrl.u32 %v1096, %v1112
  %v1115 = vor.u32 %v1113, %v1114
  %v1116 = vsub.s32 4294967266, %v1111
  %v1117 = vadd.s32 %v1116, 127
  %v1118 = vshll.u32 %v1117, 23
  %v1119 = vor.u32 4788187, %v1118
  %v1120 = vand.u32 2147483647, %v1119
  %v1122 = vcvt.s32.f32 %v1115
  %v1123 = vmul.f32 %v1122, %v1120
  %v1124 = vxor.u32 %v1123, 2147483648
  %v1125 = vsel %vm1042, %v1124, %v1123
  %v1126 = vsub.s32 4, %v1102
  %v1127 = vsel %vm1042, %v1126, %v1102
  %v1128 = vsel %vm1041, %v826, %v1125
  %v1129 = vsel %vm1041, 0, %v1127
  %v1130 = vcosq.f32.pop %v1128
  %v1131 = vsinq.f32.pop %v1128
  %vm1132 = vweird.f32 %v826
  %v1133 = vadd.s32 %v1129, 3
  %v1134 = vand.u32 %v1133, 3
  %vm1135 = vcmp.lt.s32.totalorder %v1134, 2
  %vm1136 = vcmp.eq.s32.totalorder %v1134, 0
  %v1137 = vxor.u32 %v1131, 2147483648
  %v1138 = vsel %vm1136, %v1130, %v1137
  %vm1139 = vcmp.eq.s32.totalorder %v1134, 2
  %v1140 = vxor.u32 %v1130, 2147483648
  %v1141 = vsel %vm1139, %v1140, %v1131
  %v1142 = vsel %vm1135, %v1138, %v1141
  %v1143 = vsel %vm1132, nan, %v1142
  %v1144 = vand.u32 2147483647, %v827
  %vm1145 = vcmp.le.f32.partialorder %v1144, 0.7853982
  %vm1146 = vcmp.lt.s32.totalorder %v827, 0
  %v1147 = vand.u32 %v827, 2139095040
  %v1148 = vshrl.u32 %v1147, 23
  %v1149 = vsub.s32 %v1148, 127
  %v1150 = vand.u32 2147483647, %v827
  %v1151 = vand.u32 %v1150, 8388607
  %v1152 = vor.u32 %v1151, 8388608
  %v1153 = vsub.s32 0, %v1152
  %v1154 = vadd.s32 %v1149, 1
  %vm1155 = vcmp.gt.s32.totalorder %v1154, 0
  %v1156 = vsel %vm1155, %v1154, 0
  %v1157 = vshrl.u32 %v1156, 5
  %v1158 = vand.u32 %v1156, 31
  %v1159 = vsub.s32 32, %v1158
  %v1160 = vshrl.u32 683565275, %v1159
  %v1161 = vshll.u32 683565275, %v1158
  %v1162 = vshrl.u32 2475754826, %v1159
  %v1163 = vor.u32 %v1161, %v1162
  %v1164 = vshll.u32 2475754826, %v1158
  %v1165 = vshrl.u32 2131351028, %v1159
  %v1166 = vor.u32 %v1164, %v1165
  %v1167 = vshll.u32 2131351028, %v1158
  %v1168 = vshrl.u32 2102212464, %v1159
  %v1169 = vor.u32 %v1167, %v1168
  %v1170 = vshll.u32 2102212464, %v1158
  %v1171 = vshrl.u32 920167782, %v1159
  %v1172 = vor.u32 %v1170, %v1171
  %v1173 = vshll.u32 920167782, %v1158
  %v1174 = vshrl.u32 1326507024, %v1159
  %v1175 = vor.u32 %v1173, %v1174
  %vm1176 = vcmp.lt.s32.totalorder %v1157, 1
  %vm1177 = vcmp.lt.s32.totalorder %v1157, 2
  %vm1178 = vcmp.lt.s32.totalorder %v1157, 3
  %vm1179 = vcmp.lt.s32.totalorder %v1157, 4
  %v1180 = vsel %vm1176, %v1160, %v1163
  %v1181 = vsel %vm1179, %v1169, 2102212464
  %v1182 = vsel %vm1178, %v1166, %v1181
  %v1183 = vsel %vm1177, %v1180, %v1182
  %v1184 = vsel %vm1176, %v1163, %v1166
  %v1185 = vsel %vm1179, %v1172, 920167782
  %v1186 = vsel %vm1178, %v1169, %v1185
  %v1187 = vsel %vm1177, %v1184, %v1186
  %v1188 = vsel %vm1176, %v1166, %v1169
  %v1189 = vsel %vm1179, %v1175, 1326507024
  %v1190 = vsel %vm1178, %v1172, %v1189
  %v1191 = vsel %vm1177, %v1188, %v1190
  %v1192 = vshll.u32 %v1152, 8
  %v1193 = vmul.u32.u64.compose %v1192, %v1191
  %v1194 = vextract.low.u32 %v1193
  %v1195 = vextract.high.u32 %v1193
  %v1196 = vmul.u32.u64.compose %v1192, %v1187
  %v1197 = vextract.low.u32 %v1196
  %v1198 = vextract.high.u32 %v1196
  %v1199 = vmul.u32 %v1192, %v1183
  %v1200 = vadd.s32 %v1195, %v1197
  %vm1201 = vc.u32 %v1195, %v1197
  %v1202 = vadd.s32 %v1198, 1
  %v1203 = vsel %vm1201, %v1202, %v1198
  %v1204 = vadd.s32 %v1199, %v1203
  %v1205 = vadd.s32 %v1204, 536870912
  %v1206 = vshrl.u32 %v1205, 30
  %v1207 = vshll.u32 %v1206, 30
  %v1208 = vsub.s32 %v1204, %v1207
  %vm1209 = vcmp.lt.s32.totalorder %v1208, 0
  %v1210 = vsub.s32 0, %v1208
  %v1211 = vsel %vm1209, %v1210, %v1208
  %v1212 = vclz %v1211
  %v1213 = vsub.s32 %v1212, 2
  %vm1214 = vcmp.gt.s32.totalorder 0, %v1213
  %v1215 = vsel %vm1214, 0, %v1213
  %v1216 = vsub.s32 32, %v1215
  %v1217 = vshll.u32 %v1208, %v1215
  %v1218 = vshrl.u32 %v1200, %v1216
  %v1219 = vor.u32 %v1217, %v1218
  %v1220 = vsub.s32 4294967266, %v1215
  %v1221 = vadd.s32 %v1220, 127
  %v1222 = vshll.u32 %v1221, 23
  %v1223 = vor.u32 4788187, %v1222
  %v1224 = vand.u32 2147483647, %v1223
  %v1226 = vcvt.s32.f32 %v1219
  %v1227 = vmul.f32 %v1226, %v1224
  %v1228 = vxor.u32 %v1227, 2147483648
  %v1229 = vsel %vm1146, %v1228, %v1227
  %v1230 = vsub.s32 4, %v1206
  %v1231 = vsel %vm1146, %v1230, %v1206
  %v1232 = vsel %vm1145, %v827, %v1229
  %v1233 = vsel %vm1145, 0, %v1231
  %v1234 = vcosq.f32.pop %v1232
  %v1235 = vsinq.f32.pop %v1232
  %vm1236 = vweird.f32 %v827
  %v1237 = vadd.s32 %v1233, 3
  %v1238 = vand.u32 %v1237, 3
  %vm1239 = vcmp.lt.s32.totalorder %v1238, 2
  %vm1240 = vcmp.eq.s32.totalorder %v1238, 0
  %v1241 = vxor.u32 %v1235, 2147483648
  %v1242 = vsel %vm1240, %v1234, %v1241
  %vm1243 = vcmp.eq.s32.totalorder %v1238, 2
  %v1244 = vxor.u32 %v1234, 2147483648
  %v1245 = vsel %vm1243, %v1244, %v1235
  %v1246 = vsel %vm1239, %v1242, %v1245
  %v1247 = vsel %vm1236, nan, %v1246
  %v1248 = vand.u32 2147483647, %v828
  %vm1249 = vcmp.le.f32.partialorder %v1248, 0.7853982
  %vm1250 = vcmp.lt.s32.totalorder %v828, 0
  %v1251 = vand.u32 %v828, 2139095040
  %v1252 = vshrl.u32 %v1251, 23
  %v1253 = vsub.s32 %v1252, 127
  %v1254 = vand.u32 2147483647, %v828
  %v1255 = vand.u32 %v1254, 8388607
  %v1256 = vor.u32 %v1255, 8388608
  %v1257 = vsub.s32 0, %v1256
  %v1258 = vadd.s32 %v1253, 1
  %vm1259 = vcmp.gt.s32.totalorder %v1258, 0
  %v1260 = vsel %vm1259, %v1258, 0
  %v1261 = vshrl.u32 %v1260, 5
  %v1262 = vand.u32 %v1260, 31
  %v1263 = vsub.s32 32, %v1262
  %v1264 = vshrl.u32 683565275, %v1263
  %v1265 = vshll.u32 683565275, %v1262
  %v1266 = vshrl.u32 2475754826, %v1263
  %v1267 = vor.u32 %v1265, %v1266
  %v1268 = vshll.u32 2475754826, %v1262
  %v1269 = vshrl.u32 2131351028, %v1263
  %v1270 = vor.u32 %v1268, %v1269
  %v1271 = vshll.u32 2131351028, %v1262
  %v1272 = vshrl.u32 2102212464, %v1263
  %v1273 = vor.u32 %v1271, %v1272
  %v1274 = vshll.u32 2102212464, %v1262
  %v1275 = vshrl.u32 920167782, %v1263
  %v1276 = vor.u32 %v1274, %v1275
  %v1277 = vshll.u32 920167782, %v1262
  %v1278 = vshrl.u32 1326507024, %v1263
  %v1279 = vor.u32 %v1277, %v1278
  %vm1280 = vcmp.lt.s32.totalorder %v1261, 1
  %vm1281 = vcmp.lt.s32.totalorder %v1261, 2
  %vm1282 = vcmp.lt.s32.totalorder %v1261, 3
  %vm1283 = vcmp.lt.s32.totalorder %v1261, 4
  %v1284 = vsel %vm1280, %v1264, %v1267
  %v1285 = vsel %vm1283, %v1273, 2102212464
  %v1286 = vsel %vm1282, %v1270, %v1285
  %v1287 = vsel %vm1281, %v1284, %v1286
  %v1288 = vsel %vm1280, %v1267, %v1270
  %v1289 = vsel %vm1283, %v1276, 920167782
  %v1290 = vsel %vm1282, %v1273, %v1289
  %v1291 = vsel %vm1281, %v1288, %v1290
  %v1292 = vsel %vm1280, %v1270, %v1273
  %v1293 = vsel %vm1283, %v1279, 1326507024
  %v1294 = vsel %vm1282, %v1276, %v1293
  %v1295 = vsel %vm1281, %v1292, %v1294
  %v1296 = vshll.u32 %v1256, 8
  %v1297 = vmul.u32.u64.compose %v1296, %v1295
  %v1298 = vextract.low.u32 %v1297
  %v1299 = vextract.high.u32 %v1297
  %v1300 = vmul.u32.u64.compose %v1296, %v1291
  %v1301 = vextract.low.u32 %v1300
  %v1302 = vextract.high.u32 %v1300
  %v1303 = vmul.u32 %v1296, %v1287
  %v1304 = vadd.s32 %v1299, %v1301
  %vm1305 = vc.u32 %v1299, %v1301
  %v1306 = vadd.s32 %v1302, 1
  %v1307 = vsel %vm1305, %v1306, %v1302
  %v1308 = vadd.s32 %v1303, %v1307
  %v1309 = vadd.s32 %v1308, 536870912
  %v1310 = vshrl.u32 %v1309, 30
  %v1311 = vshll.u32 %v1310, 30
  %v1312 = vsub.s32 %v1308, %v1311
  %vm1313 = vcmp.lt.s32.totalorder %v1312, 0
  %v1314 = vsub.s32 0, %v1312
  %v1315 = vsel %vm1313, %v1314, %v1312
  %v1316 = vclz %v1315
  %v1317 = vsub.s32 %v1316, 2
  %vm1318 = vcmp.gt.s32.totalorder 0, %v1317
  %v1319 = vsel %vm1318, 0, %v1317
  %v1320 = vsub.s32 32, %v1319
  %v1321 = vshll.u32 %v1312, %v1319
  %v1322 = vshrl.u32 %v1304, %v1320
  %v1323 = vor.u32 %v1321, %v1322
  %v1324 = vsub.s32 4294967266, %v1319
  %v1325 = vadd.s32 %v1324, 127
  %v1326 = vshll.u32 %v1325, 23
  %v1327 = vor.u32 4788187, %v1326
  %v1328 = vand.u32 2147483647, %v1327
  %v1330 = vcvt.s32.f32 %v1323
  %v1331 = vmul.f32 %v1330, %v1328
  %v1332 = vxor.u32 %v1331, 2147483648
  %v1333 = vsel %vm1250, %v1332, %v1331
  %v1334 = vsub.s32 4, %v1310
  %v1335 = vsel %vm1250, %v1334, %v1310
  %v1336 = vsel %vm1249, %v828, %v1333
  %v1337 = vsel %vm1249, 0, %v1335
  %v1338 = vcosq.f32.pop %v1336
  %v1339 = vsinq.f32.pop %v1336
  %vm1340 = vweird.f32 %v828
  %v1341 = vadd.s32 %v1337, 3
  %v1342 = vand.u32 %v1341, 3
  %vm1343 = vcmp.lt.s32.totalorder %v1342, 2
  %vm1344 = vcmp.eq.s32.totalorder %v1342, 0
  %v1345 = vxor.u32 %v1339, 2147483648
  %v1346 = vsel %vm1344, %v1338, %v1345
  %vm1347 = vcmp.eq.s32.totalorder %v1342, 2
  %v1348 = vxor.u32 %v1338, 2147483648
  %v1349 = vsel %vm1347, %v1348, %v1339
  %v1350 = vsel %vm1343, %v1346, %v1349
  %v1351 = vsel %vm1340, nan, %v1350
  %v1352 = vand.u32 2147483647, %v829
  %vm1353 = vcmp.le.f32.partialorder %v1352, 0.7853982
  %vm1354 = vcmp.lt.s32.totalorder %v829, 0
  %v1355 = vand.u32 %v829, 2139095040
  %v1356 = vshrl.u32 %v1355, 23
  %v1357 = vsub.s32 %v1356, 127
  %v1358 = vand.u32 2147483647, %v829
  %v1359 = vand.u32 %v1358, 8388607
  %v1360 = vor.u32 %v1359, 8388608
  %v1361 = vsub.s32 0, %v1360
  %v1362 = vadd.s32 %v1357, 1
  %vm1363 = vcmp.gt.s32.totalorder %v1362, 0
  %v1364 = vsel %vm1363, %v1362, 0
  %v1365 = vshrl.u32 %v1364, 5
  %v1366 = vand.u32 %v1364, 31
  %v1367 = vsub.s32 32, %v1366
  %v1368 = vshrl.u32 683565275, %v1367
  %v1369 = vshll.u32 683565275, %v1366
  %v1370 = vshrl.u32 2475754826, %v1367
  %v1371 = vor.u32 %v1369, %v1370
  %v1372 = vshll.u32 2475754826, %v1366
  %v1373 = vshrl.u32 2131351028, %v1367
  %v1374 = vor.u32 %v1372, %v1373
  %v1375 = vshll.u32 2131351028, %v1366
  %v1376 = vshrl.u32 2102212464, %v1367
  %v1377 = vor.u32 %v1375, %v1376
  %v1378 = vshll.u32 2102212464, %v1366
  %v1379 = vshrl.u32 920167782, %v1367
  %v1380 = vor.u32 %v1378, %v1379
  %v1381 = vshll.u32 920167782, %v1366
  %v1382 = vshrl.u32 1326507024, %v1367
  %v1383 = vor.u32 %v1381, %v1382
  %vm1384 = vcmp.lt.s32.totalorder %v1365, 1
  %vm1385 = vcmp.lt.s32.totalorder %v1365, 2
  %vm1386 = vcmp.lt.s32.totalorder %v1365, 3
  %vm1387 = vcmp.lt.s32.totalorder %v1365, 4
  %v1388 = vsel %vm1384, %v1368, %v1371
  %v1389 = vsel %vm1387, %v1377, 2102212464
  %v1390 = vsel %vm1386, %v1374, %v1389
  %v1391 = vsel %vm1385, %v1388, %v1390
  %v1392 = vsel %vm1384, %v1371, %v1374
  %v1393 = vsel %vm1387, %v1380, 920167782
  %v1394 = vsel %vm1386, %v1377, %v1393
  %v1395 = vsel %vm1385, %v1392, %v1394
  %v1396 = vsel %vm1384, %v1374, %v1377
  %v1397 = vsel %vm1387, %v1383, 1326507024
  %v1398 = vsel %vm1386, %v1380, %v1397
  %v1399 = vsel %vm1385, %v1396, %v1398
  %v1400 = vshll.u32 %v1360, 8
  %v1401 = vmul.u32.u64.compose %v1400, %v1399
  %v1402 = vextract.low.u32 %v1401
  %v1403 = vextract.high.u32 %v1401
  %v1404 = vmul.u32.u64.compose %v1400, %v1395
  %v1405 = vextract.low.u32 %v1404
  %v1406 = vextract.high.u32 %v1404
  %v1407 = vmul.u32 %v1400, %v1391
  %v1408 = vadd.s32 %v1403, %v1405
  %vm1409 = vc.u32 %v1403, %v1405
  %v1410 = vadd.s32 %v1406, 1
  %v1411 = vsel %vm1409, %v1410, %v1406
  %v1412 = vadd.s32 %v1407, %v1411
  %v1413 = vadd.s32 %v1412, 536870912
  %v1414 = vshrl.u32 %v1413, 30
  %v1415 = vshll.u32 %v1414, 30
  %v1416 = vsub.s32 %v1412, %v1415
  %vm1417 = vcmp.lt.s32.totalorder %v1416, 0
  %v1418 = vsub.s32 0, %v1416
  %v1419 = vsel %vm1417, %v1418, %v1416
  %v1420 = vclz %v1419
  %v1421 = vsub.s32 %v1420, 2
  %vm1422 = vcmp.gt.s32.totalorder 0, %v1421
  %v1423 = vsel %vm1422, 0, %v1421
  %v1424 = vsub.s32 32, %v1423
  %v1425 = vshll.u32 %v1416, %v1423
  %v1426 = vshrl.u32 %v1408, %v1424
  %v1427 = vor.u32 %v1425, %v1426
  %v1428 = vsub.s32 4294967266, %v1423
  %v1429 = vadd.s32 %v1428, 127
  %v1430 = vshll.u32 %v1429, 23
  %v1431 = vor.u32 4788187, %v1430
  %v1432 = vand.u32 2147483647, %v1431
  %v1434 = vcvt.s32.f32 %v1427
  %v1435 = vmul.f32 %v1434, %v1432
  %v1436 = vxor.u32 %v1435, 2147483648
  %v1437 = vsel %vm1354, %v1436, %v1435
  %v1438 = vsub.s32 4, %v1414
  %v1439 = vsel %vm1354, %v1438, %v1414
  %v1440 = vsel %vm1353, %v829, %v1437
  %v1441 = vsel %vm1353, 0, %v1439
  %v1442 = vcosq.f32.pop %v1440
  %v1443 = vsinq.f32.pop %v1440
  %vm1444 = vweird.f32 %v829
  %v1445 = vadd.s32 %v1441, 3
  %v1446 = vand.u32 %v1445, 3
  %vm1447 = vcmp.lt.s32.totalorder %v1446, 2
  %vm1448 = vcmp.eq.s32.totalorder %v1446, 0
  %v1449 = vxor.u32 %v1443, 2147483648
  %v1450 = vsel %vm1448, %v1442, %v1449
  %vm1451 = vcmp.eq.s32.totalorder %v1446, 2
  %v1452 = vxor.u32 %v1442, 2147483648
  %v1453 = vsel %vm1451, %v1452, %v1443
  %v1454 = vsel %vm1447, %v1450, %v1453
  %v1455 = vsel %vm1444, nan, %v1454
  %v1456 = vand.u32 2147483647, %v830
  %vm1457 = vcmp.le.f32.partialorder %v1456, 0.7853982
  %vm1458 = vcmp.lt.s32.totalorder %v830, 0
  %v1459 = vand.u32 %v830, 2139095040
  %v1460 = vshrl.u32 %v1459, 23
  %v1461 = vsub.s32 %v1460, 127
  %v1462 = vand.u32 2147483647, %v830
  %v1463 = vand.u32 %v1462, 8388607
  %v1464 = vor.u32 %v1463, 8388608
  %v1465 = vsub.s32 0, %v1464
  %v1466 = vadd.s32 %v1461, 1
  %vm1467 = vcmp.gt.s32.totalorder %v1466, 0
  %v1468 = vsel %vm1467, %v1466, 0
  %v1469 = vshrl.u32 %v1468, 5
  %v1470 = vand.u32 %v1468, 31
  %v1471 = vsub.s32 32, %v1470
  %v1472 = vshrl.u32 683565275, %v1471
  %v1473 = vshll.u32 683565275, %v1470
  %v1474 = vshrl.u32 2475754826, %v1471
  %v1475 = vor.u32 %v1473, %v1474
  %v1476 = vshll.u32 2475754826, %v1470
  %v1477 = vshrl.u32 2131351028, %v1471
  %v1478 = vor.u32 %v1476, %v1477
  %v1479 = vshll.u32 2131351028, %v1470
  %v1480 = vshrl.u32 2102212464, %v1471
  %v1481 = vor.u32 %v1479, %v1480
  %v1482 = vshll.u32 2102212464, %v1470
  %v1483 = vshrl.u32 920167782, %v1471
  %v1484 = vor.u32 %v1482, %v1483
  %v1485 = vshll.u32 920167782, %v1470
  %v1486 = vshrl.u32 1326507024, %v1471
  %v1487 = vor.u32 %v1485, %v1486
  %vm1488 = vcmp.lt.s32.totalorder %v1469, 1
  %vm1489 = vcmp.lt.s32.totalorder %v1469, 2
  %vm1490 = vcmp.lt.s32.totalorder %v1469, 3
  %vm1491 = vcmp.lt.s32.totalorder %v1469, 4
  %v1492 = vsel %vm1488, %v1472, %v1475
  %v1493 = vsel %vm1491, %v1481, 2102212464
  %v1494 = vsel %vm1490, %v1478, %v1493
  %v1495 = vsel %vm1489, %v1492, %v1494
  %v1496 = vsel %vm1488, %v1475, %v1478
  %v1497 = vsel %vm1491, %v1484, 920167782
  %v1498 = vsel %vm1490, %v1481, %v1497
  %v1499 = vsel %vm1489, %v1496, %v1498
  %v1500 = vsel %vm1488, %v1478, %v1481
  %v1501 = vsel %vm1491, %v1487, 1326507024
  %v1502 = vsel %vm1490, %v1484, %v1501
  %v1503 = vsel %vm1489, %v1500, %v1502
  %v1504 = vshll.u32 %v1464, 8
  %v1505 = vmul.u32.u64.compose %v1504, %v1503
  %v1506 = vextract.low.u32 %v1505
  %v1507 = vextract.high.u32 %v1505
  %v1508 = vmul.u32.u64.compose %v1504, %v1499
  %v1509 = vextract.low.u32 %v1508
  %v1510 = vextract.high.u32 %v1508
  %v1511 = vmul.u32 %v1504, %v1495
  %v1512 = vadd.s32 %v1507, %v1509
  %vm1513 = vc.u32 %v1507, %v1509
  %v1514 = vadd.s32 %v1510, 1
  %v1515 = vsel %vm1513, %v1514, %v1510
  %v1516 = vadd.s32 %v1511, %v1515
  %v1517 = vadd.s32 %v1516, 536870912
  %v1518 = vshrl.u32 %v1517, 30
  %v1519 = vshll.u32 %v1518, 30
  %v1520 = vsub.s32 %v1516, %v1519
  %vm1521 = vcmp.lt.s32.totalorder %v1520, 0
  %v1522 = vsub.s32 0, %v1520
  %v1523 = vsel %vm1521, %v1522, %v1520
  %v1524 = vclz %v1523
  %v1525 = vsub.s32 %v1524, 2
  %vm1526 = vcmp.gt.s32.totalorder 0, %v1525
  %v1527 = vsel %vm1526, 0, %v1525
  %v1528 = vsub.s32 32, %v1527
  %v1529 = vshll.u32 %v1520, %v1527
  %v1530 = vshrl.u32 %v1512, %v1528
  %v1531 = vor.u32 %v1529, %v1530
  %v1532 = vsub.s32 4294967266, %v1527
  %v1533 = vadd.s32 %v1532, 127
  %v1534 = vshll.u32 %v1533, 23
  %v1535 = vor.u32 4788187, %v1534
  %v1536 = vand.u32 2147483647, %v1535
  %v1538 = vcvt.s32.f32 %v1531
  %v1539 = vmul.f32 %v1538, %v1536
  %v1540 = vxor.u32 %v1539, 2147483648
  %v1541 = vsel %vm1458, %v1540, %v1539
  %v1542 = vsub.s32 4, %v1518
  %v1543 = vsel %vm1458, %v1542, %v1518
  %v1544 = vsel %vm1457, %v830, %v1541
  %v1545 = vsel %vm1457, 0, %v1543
  %v1546 = vcosq.f32.pop %v1544
  %v1547 = vsinq.f32.pop %v1544
  %vm1548 = vweird.f32 %v830
  %v1549 = vadd.s32 %v1545, 3
  %v1550 = vand.u32 %v1549, 3
  %vm1551 = vcmp.lt.s32.totalorder %v1550, 2
  %vm1552 = vcmp.eq.s32.totalorder %v1550, 0
  %v1553 = vxor.u32 %v1547, 2147483648
  %v1554 = vsel %vm1552, %v1546, %v1553
  %vm1555 = vcmp.eq.s32.totalorder %v1550, 2
  %v1556 = vxor.u32 %v1546, 2147483648
  %v1557 = vsel %vm1555, %v1556, %v1547
  %v1558 = vsel %vm1551, %v1554, %v1557
  %v1559 = vsel %vm1548, nan, %v1558
  %v1560 = vand.u32 2147483647, %v831
  %vm1561 = vcmp.le.f32.partialorder %v1560, 0.7853982
  %vm1562 = vcmp.lt.s32.totalorder %v831, 0
  %v1563 = vand.u32 %v831, 2139095040
  %v1564 = vshrl.u32 %v1563, 23
  %v1565 = vsub.s32 %v1564, 127
  %v1566 = vand.u32 2147483647, %v831
  %v1567 = vand.u32 %v1566, 8388607
  %v1568 = vor.u32 %v1567, 8388608
  %v1569 = vsub.s32 0, %v1568
  %v1570 = vadd.s32 %v1565, 1
  %vm1571 = vcmp.gt.s32.totalorder %v1570, 0
  %v1572 = vsel %vm1571, %v1570, 0
  %v1573 = vshrl.u32 %v1572, 5
  %v1574 = vand.u32 %v1572, 31
  %v1575 = vsub.s32 32, %v1574
  %v1576 = vshrl.u32 683565275, %v1575
  %v1577 = vshll.u32 683565275, %v1574
  %v1578 = vshrl.u32 2475754826, %v1575
  %v1579 = vor.u32 %v1577, %v1578
  %v1580 = vshll.u32 2475754826, %v1574
  %v1581 = vshrl.u32 2131351028, %v1575
  %v1582 = vor.u32 %v1580, %v1581
  %v1583 = vshll.u32 2131351028, %v1574
  %v1584 = vshrl.u32 2102212464, %v1575
  %v1585 = vor.u32 %v1583, %v1584
  %v1586 = vshll.u32 2102212464, %v1574
  %v1587 = vshrl.u32 920167782, %v1575
  %v1588 = vor.u32 %v1586, %v1587
  %v1589 = vshll.u32 920167782, %v1574
  %v1590 = vshrl.u32 1326507024, %v1575
  %v1591 = vor.u32 %v1589, %v1590
  %vm1592 = vcmp.lt.s32.totalorder %v1573, 1
  %vm1593 = vcmp.lt.s32.totalorder %v1573, 2
  %vm1594 = vcmp.lt.s32.totalorder %v1573, 3
  %vm1595 = vcmp.lt.s32.totalorder %v1573, 4
  %v1596 = vsel %vm1592, %v1576, %v1579
  %v1597 = vsel %vm1595, %v1585, 2102212464
  %v1598 = vsel %vm1594, %v1582, %v1597
  %v1599 = vsel %vm1593, %v1596, %v1598
  %v1600 = vsel %vm1592, %v1579, %v1582
  %v1601 = vsel %vm1595, %v1588, 920167782
  %v1602 = vsel %vm1594, %v1585, %v1601
  %v1603 = vsel %vm1593, %v1600, %v1602
  %v1604 = vsel %vm1592, %v1582, %v1585
  %v1605 = vsel %vm1595, %v1591, 1326507024
  %v1606 = vsel %vm1594, %v1588, %v1605
  %v1607 = vsel %vm1593, %v1604, %v1606
  %v1608 = vshll.u32 %v1568, 8
  %v1609 = vmul.u32.u64.compose %v1608, %v1607
  %v1610 = vextract.low.u32 %v1609
  %v1611 = vextract.high.u32 %v1609
  %v1612 = vmul.u32.u64.compose %v1608, %v1603
  %v1613 = vextract.low.u32 %v1612
  %v1614 = vextract.high.u32 %v1612
  %v1615 = vmul.u32 %v1608, %v1599
  %v1616 = vadd.s32 %v1611, %v1613
  %vm1617 = vc.u32 %v1611, %v1613
  %v1618 = vadd.s32 %v1614, 1
  %v1619 = vsel %vm1617, %v1618, %v1614
  %v1620 = vadd.s32 %v1615, %v1619
  %v1621 = vadd.s32 %v1620, 536870912
  %v1622 = vshrl.u32 %v1621, 30
  %v1623 = vshll.u32 %v1622, 30
  %v1624 = vsub.s32 %v1620, %v1623
  %vm1625 = vcmp.lt.s32.totalorder %v1624, 0
  %v1626 = vsub.s32 0, %v1624
  %v1627 = vsel %vm1625, %v1626, %v1624
  %v1628 = vclz %v1627
  %v1629 = vsub.s32 %v1628, 2
  %vm1630 = vcmp.gt.s32.totalorder 0, %v1629
  %v1631 = vsel %vm1630, 0, %v1629
  %v1632 = vsub.s32 32, %v1631
  %v1633 = vshll.u32 %v1624, %v1631
  %v1634 = vshrl.u32 %v1616, %v1632
  %v1635 = vor.u32 %v1633, %v1634
  %v1636 = vsub.s32 4294967266, %v1631
  %v1637 = vadd.s32 %v1636, 127
  %v1638 = vshll.u32 %v1637, 23
  %v1639 = vor.u32 4788187, %v1638
  %v1640 = vand.u32 2147483647, %v1639
  %v1642 = vcvt.s32.f32 %v1635
  %v1643 = vmul.f32 %v1642, %v1640
  %v1644 = vxor.u32 %v1643, 2147483648
  %v1645 = vsel %vm1562, %v1644, %v1643
  %v1646 = vsub.s32 4, %v1622
  %v1647 = vsel %vm1562, %v1646, %v1622
  %v1648 = vsel %vm1561, %v831, %v1645
  %v1649 = vsel %vm1561, 0, %v1647
  %v1650 = vcosq.f32.pop %v1648
  %v1651 = vsinq.f32.pop %v1648
  %vm1652 = vweird.f32 %v831
  %v1653 = vadd.s32 %v1649, 3
  %v1654 = vand.u32 %v1653, 3
  %vm1655 = vcmp.lt.s32.totalorder %v1654, 2
  %vm1656 = vcmp.eq.s32.totalorder %v1654, 0
  %v1657 = vxor.u32 %v1651, 2147483648
  %v1658 = vsel %vm1656, %v1650, %v1657
  %vm1659 = vcmp.eq.s32.totalorder %v1654, 2
  %v1660 = vxor.u32 %v1650, 2147483648
  %v1661 = vsel %vm1659, %v1660, %v1651
  %v1662 = vsel %vm1655, %v1658, %v1661
  %v1663 = vsel %vm1652, nan, %v1662
  %1664 = vst [vmem:[%s4] sm:$0xff] %v935
  %1665 = vst [vmem:[%s4 + $0x8] sm:$0xff] %v1039
  %1666 = vst [vmem:[%s4 + $0x10] sm:$0xff] %v1143
  %1667 = vst [vmem:[%s4 + $0x18] sm:$0xff] %v1247
  %1668 = vst [vmem:[%s4 + $0x20] sm:$0xff] %v1351
  %1669 = vst [vmem:[%s4 + $0x28] sm:$0xff] %v1455
  %1670 = vst [vmem:[%s4 + $0x30] sm:$0xff] %v1559
  %1671 = vst [vmem:[%s4 + $0x38] sm:$0xff] %v1663
  // Predicated region
  $region18: #{sinusoidal_positional_embedding.1} parent=0 // pred_check
    _
  $region19: #{sinusoidal_positional_embedding.1} parent=0 // pred_check_branch
    %1673 = sbr.rel (0) target = $region21
  $region20: #{sinusoidal_positional_embedding.1} parent=0 // pred_region
    _
  $region21: #{sinusoidal_positional_embedding.1} parent=0 // pred_fallthru
    _
  // Predicated region
  $region22: #{sinusoidal_positional_embedding.1} parent=0 // pred_check
    _
  $region23: #{sinusoidal_positional_embedding.1} parent=0 // pred_check_branch
    %1675 = sbr.rel (0) target = $region25
  $region24: #{sinusoidal_positional_embedding.1} parent=0 // pred_region
    _
  $region25: #{sinusoidal_positional_embedding.1} parent=0 // pred_fallthru
    _

</llo_original>
